<compile_context>
chip_gen: v5e
topology: v5e:2x2
jax: 0.10.0
libtpu: 0.0.40
codegen_flags: <defaults>
</compile_context>

<pallas_src>
import math
import functools

import jax
import jax.numpy as jnp
from jax.experimental import pallas as pl
from jax.experimental.pallas import tpu as pltpu


# ----------------------------------------------------------------------------
# Fused kernel: nlayers encoder layers + h2distr head + KL + reparam
# ----------------------------------------------------------------------------
def _encoder_kernel(x_ref,
                    wq_ref, wk_ref, wv_ref, wo_ref, w1_ref, w2_ref,
                    bqkv_ref, vecs_ref, fvec_ref,
                    hw_ref, hb_ref, eps_ref,
                    out_ref, kl_ref,
                    h_sc,
                    *, nhead, d_z):
    li = pl.program_id(1)
    n_layers = pl.num_programs(1)

    # Load the embedded tokens into the resident activation scratch once.
    @pl.when(li == 0)
    def _():
        h_sc[...] = x_ref[...]

    h = h_sc[...]                                   # (bb, S, D) f32
    bb, S, D = h.shape
    dh = D // nhead
    tokens = bb * S
    scale = 1.0 / math.sqrt(dh)

    h_flat = h.reshape(tokens, D)                   # leading-dim merge: no-op
    h16 = h_flat.astype(jnp.bfloat16)               # cast once, reused per head

    bqkv = bqkv_ref[0]                              # (3, nhead, dh) f32
    vecs = vecs_ref[0]                              # (6, D) f32:
                                                    # [bo, g1, b1, b2, g2, b2n]

    # ---- self attention: per-head weights, per-batch softmax ----------------
    attn = jnp.zeros((tokens, D), jnp.float32)
    for hh in range(nhead):                         # small static head loop
        q = (jnp.dot(h16, wq_ref[0, hh], preferred_element_type=jnp.float32)
             + bqkv[0, hh:hh + 1, :])
        k = (jnp.dot(h16, wk_ref[0, hh], preferred_element_type=jnp.float32)
             + bqkv[1, hh:hh + 1, :])
        v = (jnp.dot(h16, wv_ref[0, hh], preferred_element_type=jnp.float32)
             + bqkv[2, hh:hh + 1, :])
        qb = q.reshape(bb, S, dh).astype(jnp.bfloat16)
        kb = k.reshape(bb, S, dh).astype(jnp.bfloat16)
        vb = v.reshape(bb, S, dh).astype(jnp.bfloat16)
        # per-batch scores: (bb, S, S) - no block-diagonal N^2 bias needed
        s = jnp.einsum('bqd,bkd->bqk', qb, kb,
                       preferred_element_type=jnp.float32) * scale
        s = s - jnp.max(s, axis=-1, keepdims=True)
        p = jnp.exp(s)
        p = p * pl.reciprocal(jnp.sum(p, axis=-1, keepdims=True), approx=True)
        ctx = jnp.einsum('bqk,bkd->bqd', p.astype(jnp.bfloat16), vb,
                         preferred_element_type=jnp.float32)
        # fold the per-head slab of W_out here instead of concatenating heads
        attn = attn + jnp.dot(ctx.reshape(tokens, dh).astype(jnp.bfloat16),
                              wo_ref[0, hh],
                              preferred_element_type=jnp.float32)
    attn = attn + vecs[0:1, :]                      # out-proj bias

    # ---- residual + LayerNorm 1 (f32) ---------------------------------------
    h1 = h_flat + attn
    m1 = jnp.mean(h1, axis=-1, keepdims=True)
    v1 = jnp.mean((h1 - m1) ** 2, axis=-1, keepdims=True)
    h1 = (h1 - m1) * jax.lax.rsqrt(v1 + 1e-5) * vecs[1:2, :] + vecs[2:3, :]

    # ---- feed-forward (ReLU) -------------------------------------------------
    f = jnp.dot(h1.astype(jnp.bfloat16), w1_ref[0],
                preferred_element_type=jnp.float32) + fvec_ref[0]
    f = jnp.maximum(f, 0.0)
    f = jnp.dot(f.astype(jnp.bfloat16), w2_ref[0],
                preferred_element_type=jnp.float32) + vecs[3:4, :]

    # ---- residual + LayerNorm 2 (f32) ---------------------------------------
    h2 = h1 + f
    m2 = jnp.mean(h2, axis=-1, keepdims=True)
    v2 = jnp.mean((h2 - m2) ** 2, axis=-1, keepdims=True)
    h_new = (h2 - m2) * jax.lax.rsqrt(v2 + 1e-5) * vecs[4:5, :] + vecs[5:6, :]

    h_sc[...] = h_new.reshape(bb, S, D)             # stays resident in VMEM

    # ---- head (h2distr + KL + reparam) on the last layer step ---------------
    @pl.when(li == n_layers - 1)
    def _():
        h0 = h_new.reshape(bb, S, D)[:, 0, :]                   # h[:, 0, :]
        o = jnp.dot(h0.astype(jnp.bfloat16), hw_ref[...],
                    preferred_element_type=jnp.float32) + hb_ref[...]
        mu = o[:, :d_z]
        logvar = o[:, d_z:]
        kl_ref[...] = 0.5 * jnp.sum(mu * mu + jnp.exp(logvar) - logvar - 1.0,
                                    axis=1, keepdims=True)      # per-row KL
        z = eps_ref[...] * jnp.exp(0.5 * logvar) + mu           # reparam
        out_ref[...] = jnp.concatenate([z, mu, logvar], axis=-1)


# ----------------------------------------------------------------------------
# Per-generation VMEM limit (v5e/v6e: 128 MiB physical, v7x: 64 MiB per TC)
# ----------------------------------------------------------------------------
def _vmem_limit_bytes():
    try:
        cap = int(getattr(pltpu.get_tpu_info(), "vmem_capacity_bytes", 0))
    except Exception:
        cap = 0
    if cap <= 0:
        return 48 * 1024 * 1024           # conservative: fits v7x's 64 MiB/TC
    return min(int(cap * 0.8), 100 * 1024 * 1024)


# ----------------------------------------------------------------------------
# Wrapper
# ----------------------------------------------------------------------------
def tfr_encoder_forward(src, kp, eps, *, nhead, d_z, batch_block=None):
    B, S = src.shape
    D = kp["lut"].shape[1]
    L = kp["wq"].shape[0]
    d_ff = kp["w1"].shape[2]
    dh = D // nhead

    # For large B pick a batch_block that is a divisor of B (multiple of 8)
    # so the "parallel" grid axis actually shards across v7x's two cores.
    bb = B if batch_block is None else batch_block
    assert B % bb == 0
    nb = B // bb

    # Embedding gather + sqrt(d_model) scale (plain XLA glue).
    x = (jnp.take(kp["lut"], src, axis=0) * math.sqrt(D)).astype(jnp.float32)

    layer3 = lambda a, b: pl.BlockSpec((1, a, b), lambda bi, li: (li, 0, 0))
    layer4 = lambda a, b, c: pl.BlockSpec((1, a, b, c),
                                          lambda bi, li: (li, 0, 0, 0))

    # NOTE: inputs whose index_map is constant over the layer axis (x, h2d_w,
    # h2d_b, eps) are small here; single-buffering them (pl.Buffered(1)) is a
    # further VMEM saving at larger shapes.
    in_specs = [
        pl.BlockSpec((bb, S, D), lambda bi, li: (bi, 0, 0)),    # x
        layer4(nhead, D, dh),                                   # wq  (per head)
        layer4(nhead, D, dh),                                   # wk
        layer4(nhead, D, dh),                                   # wv
        layer4(nhead, dh, D),                                   # wo  (per head)
        layer3(D, d_ff),                                        # w1
        layer3(d_ff, D),                                        # w2
        layer4(3, nhead, dh),                                   # packed qkv bias
        layer3(6, D),                                           # packed D-vecs
        layer3(1, d_ff),                                        # ffn bias 1
        pl.BlockSpec((D, 2 * d_z), lambda bi, li: (0, 0)),      # h2d_w
        pl.BlockSpec((1, 2 * d_z), lambda bi, li: (0, 0)),      # h2d_b
        pl.BlockSpec((bb, d_z), lambda bi, li: (bi, 0)),        # eps
    ]
    out_specs = [
        pl.BlockSpec((bb, 3 * d_z), lambda bi, li: (bi, 0)),    # packed z|mu|lv
        pl.BlockSpec((bb, 1), lambda bi, li: (bi, 0)),          # per-row KL
    ]

    packed, kl = pl.pallas_call(
        functools.partial(_encoder_kernel, nhead=nhead, d_z=d_z),
        out_shape=(
            jax.ShapeDtypeStruct((B, 3 * d_z), jnp.float32),
            jax.ShapeDtypeStruct((B, 1), jnp.float32),
        ),
        grid_spec=pltpu.PrefetchScalarGridSpec(
            num_scalar_prefetch=0,
            grid=(nb, L),                        # (batch blocks, layers)
            in_specs=in_specs,
            out_specs=out_specs,
            scratch_shapes=[pltpu.VMEM((bb, S, D), jnp.float32)],  # resident h
        ),
        compiler_params=pltpu.CompilerParams(
            dimension_semantics=("parallel", "arbitrary"),
            vmem_limit_bytes=_vmem_limit_bytes(),
        ),
    )(x,
      kp["wq"], kp["wk"], kp["wv"], kp["wo"], kp["w1"], kp["w2"],
      kp["bqkv"], kp["vecs"], kp["b1"],
      kp["h2d_w"], kp["h2d_b"], eps)

    z = packed[:, :d_z]
    mu = packed[:, d_z:2 * d_z]
    logvar = packed[:, 2 * d_z:]
    return z[:, None, :], jnp.mean(kl), mu, logvar


# ----------------------------------------------------------------------------
# Parameters: torch-layout init, then one-time conversion to kernel layout
# (pre-transposed, per-head-split bf16 weights stacked over layers; packed
# small vectors).
# ----------------------------------------------------------------------------
def init_torch_params(key, vocab, d_model, nhead, d_ff, d_z, nlayers):
    def nrm(k, shape, scale=0.02):
        return (scale * jax.random.normal(k, shape)).astype(jnp.float32)

    keys = jax.random.split(key, 2 + nlayers)
    p = {
        "lut": jax.random.normal(keys[0], (vocab, d_model)).astype(jnp.float32),
        "h2d_w": nrm(keys[1], (2 * d_z, d_model)),
        "h2d_b": jnp.zeros((2 * d_z,), jnp.float32),
        "layers": [],
    }
    for li in range(nlayers):
        ks = jax.random.split(keys[2 + li], 4)
        p["layers"].append({
            "in_w": nrm(ks[0], (3 * d_model, d_model)),   # torch in_proj_weight
            "in_b": jnp.zeros((3 * d_model,), jnp.float32),
            "out_w": nrm(ks[1], (d_model, d_model)),
            "out_b": jnp.zeros((d_model,), jnp.float32),
            "ln1_g": jnp.ones((d_model,), jnp.float32),
            "ln1_b": jnp.zeros((d_model,), jnp.float32),
            "lin1_w": nrm(ks[2], (d_ff, d_model)),
            "lin1_b": jnp.zeros((d_ff,), jnp.float32),
            "lin2_w": nrm(ks[3], (d_model, d_ff)),
            "lin2_b": jnp.zeros((d_model,), jnp.float32),
            "ln2_g": jnp.ones((d_model,), jnp.float32),
            "ln2_b": jnp.zeros((d_model,), jnp.float32),
        })
    return p


def prepare_kernel_params(tp, d_model, nhead):
    D = d_model
    assert D % nhead == 0
    dh = D // nhead
    wdt = jnp.bfloat16

    def stack(fn):
        return jnp.stack([fn(lp) for lp in tp["layers"]], axis=0)

    def qkv_heads(w):          # torch (D_out, D_in) slice -> (nhead, D_in, dh)
        return w.T.reshape(D, nhead, dh).transpose(1, 0, 2)

    return {
        "lut": tp["lut"],
        # per-head pre-split / pre-transposed weights; bf16 for the MXU
        "wq": stack(lambda lp: qkv_heads(lp["in_w"][:D])).astype(wdt),
        "wk": stack(lambda lp: qkv_heads(lp["in_w"][D:2 * D])).astype(wdt),
        "wv": stack(lambda lp: qkv_heads(lp["in_w"][2 * D:])).astype(wdt),
        "wo": stack(lambda lp: lp["out_w"].T.reshape(nhead, dh, D)).astype(wdt),
        "w1": stack(lambda lp: lp["lin1_w"].T).astype(wdt),
        "w2": stack(lambda lp: lp["lin2_w"].T).astype(wdt),
        # packed small per-layer vectors (f32)
        "bqkv": stack(lambda lp: lp["in_b"].reshape(3, nhead, dh)),
        "vecs": stack(lambda lp: jnp.stack(
            [lp["out_b"], lp["ln1_g"], lp["ln1_b"],
             lp["lin2_b"], lp["ln2_g"], lp["ln2_b"]], axis=0)),
        "b1": stack(lambda lp: lp["lin1_b"].reshape(1, -1)),
        # head
        "h2d_w": tp["h2d_w"].T.astype(wdt),
        "h2d_b": tp["h2d_b"].reshape(1, -1),
    }


if __name__ == "__main__":
    B, S = 2, 8
    vocab, d_model, nhead, d_ff, d_z, nlayers = 50, 32, 4, 64, 16, 2

    key = jax.random.PRNGKey(0)
    k_param, k_src, k_eps = jax.random.split(key, 3)

    tparams = init_torch_params(k_param, vocab, d_model, nhead, d_ff, d_z, nlayers)
    kparams = prepare_kernel_params(tparams, d_model, nhead)
    src = jax.random.randint(k_src, (B, S), 0, vocab, dtype=jnp.int32)
    eps = jax.random.normal(k_eps, (B, d_z), dtype=jnp.float32)

    z, kl, mu, logvar = tfr_encoder_forward(src, kparams, eps,
                                            nhead=nhead, d_z=d_z)
    jax.block_until_ready((z, kl, mu, logvar))

    assert z.shape == (B, 1, d_z)
    assert kl.shape == ()
    assert mu.shape == (B, d_z)
    assert logvar.shape == (B, d_z)
    assert bool(jnp.all(jnp.isfinite(z))) and bool(jnp.isfinite(kl))
    assert bool(jnp.all(jnp.isfinite(mu))) and bool(jnp.all(jnp.isfinite(logvar)))
    print("KERNEL_OK")
</pallas_src>

<mosaic_0001>
module attributes {stable_mosaic.version = 11 : i64} {
  func.func @_encoder_kernel(%arg0: i32, %arg1: i32, %arg2: memref<2x8x32xf32, #tpu.memory_space<vmem>>, %arg3: memref<1x4x32x8xbf16, #tpu.memory_space<vmem>>, %arg4: memref<1x4x32x8xbf16, #tpu.memory_space<vmem>>, %arg5: memref<1x4x32x8xbf16, #tpu.memory_space<vmem>>, %arg6: memref<1x4x8x32xbf16, #tpu.memory_space<vmem>>, %arg7: memref<1x32x64xbf16, #tpu.memory_space<vmem>>, %arg8: memref<1x64x32xbf16, #tpu.memory_space<vmem>>, %arg9: memref<1x3x4x8xf32, #tpu.memory_space<vmem>>, %arg10: memref<1x6x32xf32, #tpu.memory_space<vmem>>, %arg11: memref<1x1x64xf32, #tpu.memory_space<vmem>>, %arg12: memref<32x32xbf16, #tpu.memory_space<vmem>>, %arg13: memref<1x32xf32, #tpu.memory_space<vmem>>, %arg14: memref<2x16xf32, #tpu.memory_space<vmem>>, %arg15: memref<2x48xf32, #tpu.memory_space<vmem>>, %arg16: memref<2x1xf32, #tpu.memory_space<vmem>>, %arg17: memref<2x8x32xf32, #tpu.memory_space<vmem>>) attributes {dimension_semantics = [#tpu.dimension_semantics<parallel>, #tpu.dimension_semantics<arbitrary>], iteration_bounds = array<i64: 1, 2>, scalar_prefetch = 0 : i64, scratch_operands = 1 : i64, tpu.core_type = #tpu.core_type<tc>, window_params = [{transform_indices = @transform_0, window_bounds = array<i64: 2, 8, 32>}, {transform_indices = @transform_1, window_bounds = array<i64: 1, 4, 32, 8>}, {transform_indices = @transform_2, window_bounds = array<i64: 1, 4, 32, 8>}, {transform_indices = @transform_3, window_bounds = array<i64: 1, 4, 32, 8>}, {transform_indices = @transform_4, window_bounds = array<i64: 1, 4, 8, 32>}, {transform_indices = @transform_5, window_bounds = array<i64: 1, 32, 64>}, {transform_indices = @transform_6, window_bounds = array<i64: 1, 64, 32>}, {transform_indices = @transform_7, window_bounds = array<i64: 1, 3, 4, 8>}, {transform_indices = @transform_8, window_bounds = array<i64: 1, 6, 32>}, {transform_indices = @transform_9, window_bounds = array<i64: 1, 1, 64>}, {pipeline_mode = #tpu.pipeline_mode<synchronous>, transform_indices = @transform_10, window_bounds = array<i64: 32, 32>}, {pipeline_mode = #tpu.pipeline_mode<synchronous>, transform_indices = @transform_11, window_bounds = array<i64: 1, 32>}, {transform_indices = @transform_12, window_bounds = array<i64: 2, 16>}, {transform_indices = @transform_13, window_bounds = array<i64: 2, 48>}, {transform_indices = @transform_14, window_bounds = array<i64: 2, 1>}]} {
    %c0_i32 = arith.constant 0 : i32
    %0 = arith.cmpi eq, %arg1, %c0_i32 : i32
    %1 = arith.extui %0 : i1 to i32
    %c0_i32_0 = arith.constant 0 : i32
    %2 = arith.cmpi ne, %1, %c0_i32_0 : i32
    scf.if %2 {
      %c0_133 = arith.constant 0 : index
      %c0_134 = arith.constant 0 : index
      %c0_135 = arith.constant 0 : index
      %278 = vector.load %arg2[%c0_133, %c0_134, %c0_135] : memref<2x8x32xf32, #tpu.memory_space<vmem>>, vector<2x8x32xf32>
      %c0_136 = arith.constant 0 : index
      %c0_137 = arith.constant 0 : index
      %c0_138 = arith.constant 0 : index
      %279 = vector.load %arg17[%c0_136, %c0_137, %c0_138] : memref<2x8x32xf32, #tpu.memory_space<vmem>>, vector<2x8x32xf32>
      tpu.vector_store %arg17[%c0_136, %c0_137, %c0_138], %278 {strides = array<i32>} : memref<2x8x32xf32, #tpu.memory_space<vmem>>, vector<2x8x32xf32>,
    } else {
    }
    %c0 = arith.constant 0 : index
    %c0_1 = arith.constant 0 : index
    %c0_2 = arith.constant 0 : index
    %3 = vector.load %arg17[%c0, %c0_1, %c0_2] : memref<2x8x32xf32, #tpu.memory_space<vmem>>, vector<2x8x32xf32>
    %4 = vector.shape_cast %3 : vector<2x8x32xf32> to vector<16x32xf32>
    %5 = arith.truncf %4 : vector<16x32xf32> to vector<16x32xbf16>
    %c0_3 = arith.constant 0 : index
    %c0_4 = arith.constant 0 : index
    %c0_5 = arith.constant 0 : index
    %c0_6 = arith.constant 0 : index
    %6 = vector.load %arg9[%c0_3, %c0_4, %c0_5, %c0_6] : memref<1x3x4x8xf32, #tpu.memory_space<vmem>>, vector<1x3x4x8xf32>
    %7 = vector.shape_cast %6 : vector<1x3x4x8xf32> to vector<3x4x8xf32>
    %c0_7 = arith.constant 0 : index
    %c0_8 = arith.constant 0 : index
    %c0_9 = arith.constant 0 : index
    %8 = vector.load %arg10[%c0_7, %c0_8, %c0_9] : memref<1x6x32xf32, #tpu.memory_space<vmem>>, vector<1x6x32xf32>
    %9 = vector.shape_cast %8 : vector<1x6x32xf32> to vector<6x32xf32>
    %cst = arith.constant 0.000000e+00 : f32
    %10 = vector.broadcast %cst : f32 to vector<16x32xf32>
    %c0_10 = arith.constant 0 : index
    %c0_11 = arith.constant 0 : index
    %c0_12 = arith.constant 0 : index
    %c0_13 = arith.constant 0 : index
    %11 = vector.load %arg3[%c0_10, %c0_11, %c0_12, %c0_13] : memref<1x4x32x8xbf16, #tpu.memory_space<vmem>>, vector<1x1x32x8xbf16>
    %12 = vector.shape_cast %11 : vector<1x1x32x8xbf16> to vector<32x8xbf16>
    %cst_14 = arith.constant dense<0.000000e+00> : vector<16x8xf32>
    %13 = tpu.matmul %5, %12, %cst_14 {dimension_numbers = #tpu.dot_dimension_numbers<[1], [0], [0], [1], [0, 0, 1, 1], [], []>} : vector<16x32xbf16>, vector<32x8xbf16>, vector<16x8xf32> -> vector<16x8xf32>
    %14 = vector.extract_strided_slice %7 {offsets = [0, 0, 0], sizes = [1, 1, 8], strides = [1, 1, 1]} : vector<3x4x8xf32> to vector<1x1x8xf32>
    %15 = vector.shape_cast %14 : vector<1x1x8xf32> to vector<1x8xf32>
    %16 = vector.broadcast %15 : vector<1x8xf32> to vector<16x8xf32>
    %17 = arith.addf %13, %16 : vector<16x8xf32>
    %c0_15 = arith.constant 0 : index
    %c0_16 = arith.constant 0 : index
    %c0_17 = arith.constant 0 : index
    %c0_18 = arith.constant 0 : index
    %18 = vector.load %arg4[%c0_15, %c0_16, %c0_17, %c0_18] : memref<1x4x32x8xbf16, #tpu.memory_space<vmem>>, vector<1x1x32x8xbf16>
    %19 = vector.shape_cast %18 : vector<1x1x32x8xbf16> to vector<32x8xbf16>
    %cst_19 = arith.constant dense<0.000000e+00> : vector<16x8xf32>
    %20 = tpu.matmul %5, %19, %cst_19 {dimension_numbers = #tpu.dot_dimension_numbers<[1], [0], [0], [1], [0, 0, 1, 1], [], []>} : vector<16x32xbf16>, vector<32x8xbf16>, vector<16x8xf32> -> vector<16x8xf32>
    %21 = vector.extract_strided_slice %7 {offsets = [1, 0, 0], sizes = [1, 1, 8], strides = [1, 1, 1]} : vector<3x4x8xf32> to vector<1x1x8xf32>
    %22 = vector.shape_cast %21 : vector<1x1x8xf32> to vector<1x8xf32>
    %23 = vector.broadcast %22 : vector<1x8xf32> to vector<16x8xf32>
    %24 = arith.addf %20, %23 : vector<16x8xf32>
    %c0_20 = arith.constant 0 : index
    %c0_21 = arith.constant 0 : index
    %c0_22 = arith.constant 0 : index
    %c0_23 = arith.constant 0 : index
    %25 = vector.load %arg5[%c0_20, %c0_21, %c0_22, %c0_23] : memref<1x4x32x8xbf16, #tpu.memory_space<vmem>>, vector<1x1x32x8xbf16>
    %26 = vector.shape_cast %25 : vector<1x1x32x8xbf16> to vector<32x8xbf16>
    %cst_24 = arith.constant dense<0.000000e+00> : vector<16x8xf32>
    %27 = tpu.matmul %5, %26, %cst_24 {dimension_numbers = #tpu.dot_dimension_numbers<[1], [0], [0], [1], [0, 0, 1, 1], [], []>} : vector<16x32xbf16>, vector<32x8xbf16>, vector<16x8xf32> -> vector<16x8xf32>
    %28 = vector.extract_strided_slice %7 {offsets = [2, 0, 0], sizes = [1, 1, 8], strides = [1, 1, 1]} : vector<3x4x8xf32> to vector<1x1x8xf32>
    %29 = vector.shape_cast %28 : vector<1x1x8xf32> to vector<1x8xf32>
    %30 = vector.broadcast %29 : vector<1x8xf32> to vector<16x8xf32>
    %31 = arith.addf %27, %30 : vector<16x8xf32>
    %32 = vector.shape_cast %17 : vector<16x8xf32> to vector<2x8x8xf32>
    %33 = arith.truncf %32 : vector<2x8x8xf32> to vector<2x8x8xbf16>
    %34 = vector.shape_cast %24 : vector<16x8xf32> to vector<2x8x8xf32>
    %35 = arith.truncf %34 : vector<2x8x8xf32> to vector<2x8x8xbf16>
    %36 = vector.shape_cast %31 : vector<16x8xf32> to vector<2x8x8xf32>
    %37 = arith.truncf %36 : vector<2x8x8xf32> to vector<2x8x8xbf16>
    "tpu.trace_start"() <{level = 10 : i32, message = "bqd,bkd->bqk"}> : () -> ()
    %cst_25 = arith.constant dense<0.000000e+00> : vector<2x8x8xf32>
    %38 = tpu.matmul %33, %35, %cst_25 {dimension_numbers = #tpu.dot_dimension_numbers<[2], [2], [1], [1], [0, 0, 0, 1, 1, 1], [0], [0]>} : vector<2x8x8xbf16>, vector<2x8x8xbf16>, vector<2x8x8xf32> -> vector<2x8x8xf32>
    "tpu.trace_stop"() : () -> ()
    %cst_26 = arith.constant 0.353553385 : f32
    %39 = vector.broadcast %cst_26 : f32 to vector<2x8x8xf32>
    %40 = arith.mulf %38, %39 : vector<2x8x8xf32>
    %cst_27 = arith.constant dense<0xFF800000> : vector<2x8xf32>
    %41 = vector.multi_reduction <maximumf>, %40, %cst_27 [2] : vector<2x8x8xf32> to vector<2x8xf32>
    %42 = vector.shape_cast %41 : vector<2x8xf32> to vector<2x8x1xf32>
    %43 = vector.broadcast %42 : vector<2x8x1xf32> to vector<2x8x8xf32>
    %44 = arith.subf %40, %43 : vector<2x8x8xf32>
    %45 = math.exp %44 : vector<2x8x8xf32>
    %cst_28 = arith.constant dense<0.000000e+00> : vector<2x8xf32>
    %46 = vector.multi_reduction <add>, %45, %cst_28 [2] : vector<2x8x8xf32> to vector<2x8xf32>
    %47 = vector.shape_cast %46 : vector<2x8xf32> to vector<2x8x1xf32>
    %48 = tpu.reciprocal %47 {approx = true} : vector<2x8x1xf32> -> vector<2x8x1xf32>
    %49 = vector.broadcast %48 : vector<2x8x1xf32> to vector<2x8x8xf32>
    %50 = arith.mulf %45, %49 : vector<2x8x8xf32>
    %51 = arith.truncf %50 : vector<2x8x8xf32> to vector<2x8x8xbf16>
    "tpu.trace_start"() <{level = 10 : i32, message = "bqk,bkd->bqd"}> : () -> ()
    %cst_29 = arith.constant dense<0.000000e+00> : vector<2x8x8xf32>
    %52 = tpu.matmul %51, %37, %cst_29 {dimension_numbers = #tpu.dot_dimension_numbers<[2], [1], [1], [2], [0, 0, 0, 1, 1, 2], [0], [0]>} : vector<2x8x8xbf16>, vector<2x8x8xbf16>, vector<2x8x8xf32> -> vector<2x8x8xf32>
    "tpu.trace_stop"() : () -> ()
    %53 = vector.shape_cast %52 : vector<2x8x8xf32> to vector<16x8xf32>
    %54 = arith.truncf %53 : vector<16x8xf32> to vector<16x8xbf16>
    %c0_30 = arith.constant 0 : index
    %c0_31 = arith.constant 0 : index
    %c0_32 = arith.constant 0 : index
    %c0_33 = arith.constant 0 : index
    %55 = vector.load %arg6[%c0_30, %c0_31, %c0_32, %c0_33] : memref<1x4x8x32xbf16, #tpu.memory_space<vmem>>, vector<1x1x8x32xbf16>
    %56 = vector.shape_cast %55 : vector<1x1x8x32xbf16> to vector<8x32xbf16>
    %cst_34 = arith.constant dense<0.000000e+00> : vector<16x32xf32>
    %57 = tpu.matmul %54, %56, %cst_34 {dimension_numbers = #tpu.dot_dimension_numbers<[1], [0], [0], [1], [0, 0, 1, 1], [], []>} : vector<16x8xbf16>, vector<8x32xbf16>, vector<16x32xf32> -> vector<16x32xf32>
    %58 = arith.addf %10, %57 : vector<16x32xf32>
    %c0_35 = arith.constant 0 : index
    %c1 = arith.constant 1 : index
    %c0_36 = arith.constant 0 : index
    %c0_37 = arith.constant 0 : index
    %59 = vector.load %arg3[%c0_35, %c1, %c0_36, %c0_37] : memref<1x4x32x8xbf16, #tpu.memory_space<vmem>>, vector<1x1x32x8xbf16>
    %60 = vector.shape_cast %59 : vector<1x1x32x8xbf16> to vector<32x8xbf16>
    %cst_38 = arith.constant dense<0.000000e+00> : vector<16x8xf32>
    %61 = tpu.matmul %5, %60, %cst_38 {dimension_numbers = #tpu.dot_dimension_numbers<[1], [0], [0], [1], [0, 0, 1, 1], [], []>} : vector<16x32xbf16>, vector<32x8xbf16>, vector<16x8xf32> -> vector<16x8xf32>
    %62 = vector.extract_strided_slice %7 {offsets = [0, 1, 0], sizes = [1, 1, 8], strides = [1, 1, 1]} : vector<3x4x8xf32> to vector<1x1x8xf32>
    %63 = vector.shape_cast %62 : vector<1x1x8xf32> to vector<1x8xf32>
    %64 = vector.broadcast %63 : vector<1x8xf32> to vector<16x8xf32>
    %65 = arith.addf %61, %64 : vector<16x8xf32>
    %c0_39 = arith.constant 0 : index
    %c1_40 = arith.constant 1 : index
    %c0_41 = arith.constant 0 : index
    %c0_42 = arith.constant 0 : index
    %66 = vector.load %arg4[%c0_39, %c1_40, %c0_41, %c0_42] : memref<1x4x32x8xbf16, #tpu.memory_space<vmem>>, vector<1x1x32x8xbf16>
    %67 = vector.shape_cast %66 : vector<1x1x32x8xbf16> to vector<32x8xbf16>
    %cst_43 = arith.constant dense<0.000000e+00> : vector<16x8xf32>
    %68 = tpu.matmul %5, %67, %cst_43 {dimension_numbers = #tpu.dot_dimension_numbers<[1], [0], [0], [1], [0, 0, 1, 1], [], []>} : vector<16x32xbf16>, vector<32x8xbf16>, vector<16x8xf32> -> vector<16x8xf32>
    %69 = vector.extract_strided_slice %7 {offsets = [1, 1, 0], sizes = [1, 1, 8], strides = [1, 1, 1]} : vector<3x4x8xf32> to vector<1x1x8xf32>
    %70 = vector.shape_cast %69 : vector<1x1x8xf32> to vector<1x8xf32>
    %71 = vector.broadcast %70 : vector<1x8xf32> to vector<16x8xf32>
    %72 = arith.addf %68, %71 : vector<16x8xf32>
    %c0_44 = arith.constant 0 : index
    %c1_45 = arith.constant 1 : index
    %c0_46 = arith.constant 0 : index
    %c0_47 = arith.constant 0 : index
    %73 = vector.load %arg5[%c0_44, %c1_45, %c0_46, %c0_47] : memref<1x4x32x8xbf16, #tpu.memory_space<vmem>>, vector<1x1x32x8xbf16>
    %74 = vector.shape_cast %73 : vector<1x1x32x8xbf16> to vector<32x8xbf16>
    %cst_48 = arith.constant dense<0.000000e+00> : vector<16x8xf32>
    %75 = tpu.matmul %5, %74, %cst_48 {dimension_numbers = #tpu.dot_dimension_numbers<[1], [0], [0], [1], [0, 0, 1, 1], [], []>} : vector<16x32xbf16>, vector<32x8xbf16>, vector<16x8xf32> -> vector<16x8xf32>
    %76 = vector.extract_strided_slice %7 {offsets = [2, 1, 0], sizes = [1, 1, 8], strides = [1, 1, 1]} : vector<3x4x8xf32> to vector<1x1x8xf32>
    %77 = vector.shape_cast %76 : vector<1x1x8xf32> to vector<1x8xf32>
    %78 = vector.broadcast %77 : vector<1x8xf32> to vector<16x8xf32>
    %79 = arith.addf %75, %78 : vector<16x8xf32>
    %80 = vector.shape_cast %65 : vector<16x8xf32> to vector<2x8x8xf32>
    %81 = arith.truncf %80 : vector<2x8x8xf32> to vector<2x8x8xbf16>
    %82 = vector.shape_cast %72 : vector<16x8xf32> to vector<2x8x8xf32>
    %83 = arith.truncf %82 : vector<2x8x8xf32> to vector<2x8x8xbf16>
    %84 = vector.shape_cast %79 : vector<16x8xf32> to vector<2x8x8xf32>
    %85 = arith.truncf %84 : vector<2x8x8xf32> to vector<2x8x8xbf16>
    "tpu.trace_start"() <{level = 10 : i32, message = "bqd,bkd->bqk"}> : () -> ()
    %cst_49 = arith.constant dense<0.000000e+00> : vector<2x8x8xf32>
    %86 = tpu.matmul %81, %83, %cst_49 {dimension_numbers = #tpu.dot_dimension_numbers<[2], [2], [1], [1], [0, 0, 0, 1, 1, 1], [0], [0]>} : vector<2x8x8xbf16>, vector<2x8x8xbf16>, vector<2x8x8xf32> -> vector<2x8x8xf32>
    "tpu.trace_stop"() : () -> ()
    %cst_50 = arith.constant 0.353553385 : f32
    %87 = vector.broadcast %cst_50 : f32 to vector<2x8x8xf32>
    %88 = arith.mulf %86, %87 : vector<2x8x8xf32>
    %cst_51 = arith.constant dense<0xFF800000> : vector<2x8xf32>
    %89 = vector.multi_reduction <maximumf>, %88, %cst_51 [2] : vector<2x8x8xf32> to vector<2x8xf32>
    %90 = vector.shape_cast %89 : vector<2x8xf32> to vector<2x8x1xf32>
    %91 = vector.broadcast %90 : vector<2x8x1xf32> to vector<2x8x8xf32>
    %92 = arith.subf %88, %91 : vector<2x8x8xf32>
    %93 = math.exp %92 : vector<2x8x8xf32>
    %cst_52 = arith.constant dense<0.000000e+00> : vector<2x8xf32>
    %94 = vector.multi_reduction <add>, %93, %cst_52 [2] : vector<2x8x8xf32> to vector<2x8xf32>
    %95 = vector.shape_cast %94 : vector<2x8xf32> to vector<2x8x1xf32>
    %96 = tpu.reciprocal %95 {approx = true} : vector<2x8x1xf32> -> vector<2x8x1xf32>
    %97 = vector.broadcast %96 : vector<2x8x1xf32> to vector<2x8x8xf32>
    %98 = arith.mulf %93, %97 : vector<2x8x8xf32>
    %99 = arith.truncf %98 : vector<2x8x8xf32> to vector<2x8x8xbf16>
    "tpu.trace_start"() <{level = 10 : i32, message = "bqk,bkd->bqd"}> : () -> ()
    %cst_53 = arith.constant dense<0.000000e+00> : vector<2x8x8xf32>
    %100 = tpu.matmul %99, %85, %cst_53 {dimension_numbers = #tpu.dot_dimension_numbers<[2], [1], [1], [2], [0, 0, 0, 1, 1, 2], [0], [0]>} : vector<2x8x8xbf16>, vector<2x8x8xbf16>, vector<2x8x8xf32> -> vector<2x8x8xf32>
    "tpu.trace_stop"() : () -> ()
    %101 = vector.shape_cast %100 : vector<2x8x8xf32> to vector<16x8xf32>
    %102 = arith.truncf %101 : vector<16x8xf32> to vector<16x8xbf16>
    %c0_54 = arith.constant 0 : index
    %c1_55 = arith.constant 1 : index
    %c0_56 = arith.constant 0 : index
    %c0_57 = arith.constant 0 : index
    %103 = vector.load %arg6[%c0_54, %c1_55, %c0_56, %c0_57] : memref<1x4x8x32xbf16, #tpu.memory_space<vmem>>, vector<1x1x8x32xbf16>
    %104 = vector.shape_cast %103 : vector<1x1x8x32xbf16> to vector<8x32xbf16>
    %cst_58 = arith.constant dense<0.000000e+00> : vector<16x32xf32>
    %105 = tpu.matmul %102, %104, %cst_58 {dimension_numbers = #tpu.dot_dimension_numbers<[1], [0], [0], [1], [0, 0, 1, 1], [], []>} : vector<16x8xbf16>, vector<8x32xbf16>, vector<16x32xf32> -> vector<16x32xf32>
    %106 = arith.addf %58, %105 : vector<16x32xf32>
    %c0_59 = arith.constant 0 : index
    %c2 = arith.constant 2 : index
    %c0_60 = arith.constant 0 : index
    %c0_61 = arith.constant 0 : index
    %107 = vector.load %arg3[%c0_59, %c2, %c0_60, %c0_61] : memref<1x4x32x8xbf16, #tpu.memory_space<vmem>>, vector<1x1x32x8xbf16>
    %108 = vector.shape_cast %107 : vector<1x1x32x8xbf16> to vector<32x8xbf16>
    %cst_62 = arith.constant dense<0.000000e+00> : vector<16x8xf32>
    %109 = tpu.matmul %5, %108, %cst_62 {dimension_numbers = #tpu.dot_dimension_numbers<[1], [0], [0], [1], [0, 0, 1, 1], [], []>} : vector<16x32xbf16>, vector<32x8xbf16>, vector<16x8xf32> -> vector<16x8xf32>
    %110 = vector.extract_strided_slice %7 {offsets = [0, 2, 0], sizes = [1, 1, 8], strides = [1, 1, 1]} : vector<3x4x8xf32> to vector<1x1x8xf32>
    %111 = vector.shape_cast %110 : vector<1x1x8xf32> to vector<1x8xf32>
    %112 = vector.broadcast %111 : vector<1x8xf32> to vector<16x8xf32>
    %113 = arith.addf %109, %112 : vector<16x8xf32>
    %c0_63 = arith.constant 0 : index
    %c2_64 = arith.constant 2 : index
    %c0_65 = arith.constant 0 : index
    %c0_66 = arith.constant 0 : index
    %114 = vector.load %arg4[%c0_63, %c2_64, %c0_65, %c0_66] : memref<1x4x32x8xbf16, #tpu.memory_space<vmem>>, vector<1x1x32x8xbf16>
    %115 = vector.shape_cast %114 : vector<1x1x32x8xbf16> to vector<32x8xbf16>
    %cst_67 = arith.constant dense<0.000000e+00> : vector<16x8xf32>
    %116 = tpu.matmul %5, %115, %cst_67 {dimension_numbers = #tpu.dot_dimension_numbers<[1], [0], [0], [1], [0, 0, 1, 1], [], []>} : vector<16x32xbf16>, vector<32x8xbf16>, vector<16x8xf32> -> vector<16x8xf32>
    %117 = vector.extract_strided_slice %7 {offsets = [1, 2, 0], sizes = [1, 1, 8], strides = [1, 1, 1]} : vector<3x4x8xf32> to vector<1x1x8xf32>
    %118 = vector.shape_cast %117 : vector<1x1x8xf32> to vector<1x8xf32>
    %119 = vector.broadcast %118 : vector<1x8xf32> to vector<16x8xf32>
    %120 = arith.addf %116, %119 : vector<16x8xf32>
    %c0_68 = arith.constant 0 : index
    %c2_69 = arith.constant 2 : index
    %c0_70 = arith.constant 0 : index
    %c0_71 = arith.constant 0 : index
    %121 = vector.load %arg5[%c0_68, %c2_69, %c0_70, %c0_71] : memref<1x4x32x8xbf16, #tpu.memory_space<vmem>>, vector<1x1x32x8xbf16>
    %122 = vector.shape_cast %121 : vector<1x1x32x8xbf16> to vector<32x8xbf16>
    %cst_72 = arith.constant dense<0.000000e+00> : vector<16x8xf32>
    %123 = tpu.matmul %5, %122, %cst_72 {dimension_numbers = #tpu.dot_dimension_numbers<[1], [0], [0], [1], [0, 0, 1, 1], [], []>} : vector<16x32xbf16>, vector<32x8xbf16>, vector<16x8xf32> -> vector<16x8xf32>
    %124 = vector.extract_strided_slice %7 {offsets = [2, 2, 0], sizes = [1, 1, 8], strides = [1, 1, 1]} : vector<3x4x8xf32> to vector<1x1x8xf32>
    %125 = vector.shape_cast %124 : vector<1x1x8xf32> to vector<1x8xf32>
    %126 = vector.broadcast %125 : vector<1x8xf32> to vector<16x8xf32>
    %127 = arith.addf %123, %126 : vector<16x8xf32>
    %128 = vector.shape_cast %113 : vector<16x8xf32> to vector<2x8x8xf32>
    %129 = arith.truncf %128 : vector<2x8x8xf32> to vector<2x8x8xbf16>
    %130 = vector.shape_cast %120 : vector<16x8xf32> to vector<2x8x8xf32>
    %131 = arith.truncf %130 : vector<2x8x8xf32> to vector<2x8x8xbf16>
    %132 = vector.shape_cast %127 : vector<16x8xf32> to vector<2x8x8xf32>
    %133 = arith.truncf %132 : vector<2x8x8xf32> to vector<2x8x8xbf16>
    "tpu.trace_start"() <{level = 10 : i32, message = "bqd,bkd->bqk"}> : () -> ()
    %cst_73 = arith.constant dense<0.000000e+00> : vector<2x8x8xf32>
    %134 = tpu.matmul %129, %131, %cst_73 {dimension_numbers = #tpu.dot_dimension_numbers<[2], [2], [1], [1], [0, 0, 0, 1, 1, 1], [0], [0]>} : vector<2x8x8xbf16>, vector<2x8x8xbf16>, vector<2x8x8xf32> -> vector<2x8x8xf32>
    "tpu.trace_stop"() : () -> ()
    %cst_74 = arith.constant 0.353553385 : f32
    %135 = vector.broadcast %cst_74 : f32 to vector<2x8x8xf32>
    %136 = arith.mulf %134, %135 : vector<2x8x8xf32>
    %cst_75 = arith.constant dense<0xFF800000> : vector<2x8xf32>
    %137 = vector.multi_reduction <maximumf>, %136, %cst_75 [2] : vector<2x8x8xf32> to vector<2x8xf32>
    %138 = vector.shape_cast %137 : vector<2x8xf32> to vector<2x8x1xf32>
    %139 = vector.broadcast %138 : vector<2x8x1xf32> to vector<2x8x8xf32>
    %140 = arith.subf %136, %139 : vector<2x8x8xf32>
    %141 = math.exp %140 : vector<2x8x8xf32>
    %cst_76 = arith.constant dense<0.000000e+00> : vector<2x8xf32>
    %142 = vector.multi_reduction <add>, %141, %cst_76 [2] : vector<2x8x8xf32> to vector<2x8xf32>
    %143 = vector.shape_cast %142 : vector<2x8xf32> to vector<2x8x1xf32>
    %144 = tpu.reciprocal %143 {approx = true} : vector<2x8x1xf32> -> vector<2x8x1xf32>
    %145 = vector.broadcast %144 : vector<2x8x1xf32> to vector<2x8x8xf32>
    %146 = arith.mulf %141, %145 : vector<2x8x8xf32>
    %147 = arith.truncf %146 : vector<2x8x8xf32> to vector<2x8x8xbf16>
    "tpu.trace_start"() <{level = 10 : i32, message = "bqk,bkd->bqd"}> : () -> ()
    %cst_77 = arith.constant dense<0.000000e+00> : vector<2x8x8xf32>
    %148 = tpu.matmul %147, %133, %cst_77 {dimension_numbers = #tpu.dot_dimension_numbers<[2], [1], [1], [2], [0, 0, 0, 1, 1, 2], [0], [0]>} : vector<2x8x8xbf16>, vector<2x8x8xbf16>, vector<2x8x8xf32> -> vector<2x8x8xf32>
    "tpu.trace_stop"() : () -> ()
    %149 = vector.shape_cast %148 : vector<2x8x8xf32> to vector<16x8xf32>
    %150 = arith.truncf %149 : vector<16x8xf32> to vector<16x8xbf16>
    %c0_78 = arith.constant 0 : index
    %c2_79 = arith.constant 2 : index
    %c0_80 = arith.constant 0 : index
    %c0_81 = arith.constant 0 : index
    %151 = vector.load %arg6[%c0_78, %c2_79, %c0_80, %c0_81] : memref<1x4x8x32xbf16, #tpu.memory_space<vmem>>, vector<1x1x8x32xbf16>
    %152 = vector.shape_cast %151 : vector<1x1x8x32xbf16> to vector<8x32xbf16>
    %cst_82 = arith.constant dense<0.000000e+00> : vector<16x32xf32>
    %153 = tpu.matmul %150, %152, %cst_82 {dimension_numbers = #tpu.dot_dimension_numbers<[1], [0], [0], [1], [0, 0, 1, 1], [], []>} : vector<16x8xbf16>, vector<8x32xbf16>, vector<16x32xf32> -> vector<16x32xf32>
    %154 = arith.addf %106, %153 : vector<16x32xf32>
    %c0_83 = arith.constant 0 : index
    %c3 = arith.constant 3 : index
    %c0_84 = arith.constant 0 : index
    %c0_85 = arith.constant 0 : index
    %155 = vector.load %arg3[%c0_83, %c3, %c0_84, %c0_85] : memref<1x4x32x8xbf16, #tpu.memory_space<vmem>>, vector<1x1x32x8xbf16>
    %156 = vector.shape_cast %155 : vector<1x1x32x8xbf16> to vector<32x8xbf16>
    %cst_86 = arith.constant dense<0.000000e+00> : vector<16x8xf32>
    %157 = tpu.matmul %5, %156, %cst_86 {dimension_numbers = #tpu.dot_dimension_numbers<[1], [0], [0], [1], [0, 0, 1, 1], [], []>} : vector<16x32xbf16>, vector<32x8xbf16>, vector<16x8xf32> -> vector<16x8xf32>
    %158 = vector.extract_strided_slice %7 {offsets = [0, 3, 0], sizes = [1, 1, 8], strides = [1, 1, 1]} : vector<3x4x8xf32> to vector<1x1x8xf32>
    %159 = vector.shape_cast %158 : vector<1x1x8xf32> to vector<1x8xf32>
    %160 = vector.broadcast %159 : vector<1x8xf32> to vector<16x8xf32>
    %161 = arith.addf %157, %160 : vector<16x8xf32>
    %c0_87 = arith.constant 0 : index
    %c3_88 = arith.constant 3 : index
    %c0_89 = arith.constant 0 : index
    %c0_90 = arith.constant 0 : index
    %162 = vector.load %arg4[%c0_87, %c3_88, %c0_89, %c0_90] : memref<1x4x32x8xbf16, #tpu.memory_space<vmem>>, vector<1x1x32x8xbf16>
    %163 = vector.shape_cast %162 : vector<1x1x32x8xbf16> to vector<32x8xbf16>
    %cst_91 = arith.constant dense<0.000000e+00> : vector<16x8xf32>
    %164 = tpu.matmul %5, %163, %cst_91 {dimension_numbers = #tpu.dot_dimension_numbers<[1], [0], [0], [1], [0, 0, 1, 1], [], []>} : vector<16x32xbf16>, vector<32x8xbf16>, vector<16x8xf32> -> vector<16x8xf32>
    %165 = vector.extract_strided_slice %7 {offsets = [1, 3, 0], sizes = [1, 1, 8], strides = [1, 1, 1]} : vector<3x4x8xf32> to vector<1x1x8xf32>
    %166 = vector.shape_cast %165 : vector<1x1x8xf32> to vector<1x8xf32>
    %167 = vector.broadcast %166 : vector<1x8xf32> to vector<16x8xf32>
    %168 = arith.addf %164, %167 : vector<16x8xf32>
    %c0_92 = arith.constant 0 : index
    %c3_93 = arith.constant 3 : index
    %c0_94 = arith.constant 0 : index
    %c0_95 = arith.constant 0 : index
    %169 = vector.load %arg5[%c0_92, %c3_93, %c0_94, %c0_95] : memref<1x4x32x8xbf16, #tpu.memory_space<vmem>>, vector<1x1x32x8xbf16>
    %170 = vector.shape_cast %169 : vector<1x1x32x8xbf16> to vector<32x8xbf16>
    %cst_96 = arith.constant dense<0.000000e+00> : vector<16x8xf32>
    %171 = tpu.matmul %5, %170, %cst_96 {dimension_numbers = #tpu.dot_dimension_numbers<[1], [0], [0], [1], [0, 0, 1, 1], [], []>} : vector<16x32xbf16>, vector<32x8xbf16>, vector<16x8xf32> -> vector<16x8xf32>
    %172 = vector.extract_strided_slice %7 {offsets = [2, 3, 0], sizes = [1, 1, 8], strides = [1, 1, 1]} : vector<3x4x8xf32> to vector<1x1x8xf32>
    %173 = vector.shape_cast %172 : vector<1x1x8xf32> to vector<1x8xf32>
    %174 = vector.broadcast %173 : vector<1x8xf32> to vector<16x8xf32>
    %175 = arith.addf %171, %174 : vector<16x8xf32>
    %176 = vector.shape_cast %161 : vector<16x8xf32> to vector<2x8x8xf32>
    %177 = arith.truncf %176 : vector<2x8x8xf32> to vector<2x8x8xbf16>
    %178 = vector.shape_cast %168 : vector<16x8xf32> to vector<2x8x8xf32>
    %179 = arith.truncf %178 : vector<2x8x8xf32> to vector<2x8x8xbf16>
    %180 = vector.shape_cast %175 : vector<16x8xf32> to vector<2x8x8xf32>
    %181 = arith.truncf %180 : vector<2x8x8xf32> to vector<2x8x8xbf16>
    "tpu.trace_start"() <{level = 10 : i32, message = "bqd,bkd->bqk"}> : () -> ()
    %cst_97 = arith.constant dense<0.000000e+00> : vector<2x8x8xf32>
    %182 = tpu.matmul %177, %179, %cst_97 {dimension_numbers = #tpu.dot_dimension_numbers<[2], [2], [1], [1], [0, 0, 0, 1, 1, 1], [0], [0]>} : vector<2x8x8xbf16>, vector<2x8x8xbf16>, vector<2x8x8xf32> -> vector<2x8x8xf32>
    "tpu.trace_stop"() : () -> ()
    %cst_98 = arith.constant 0.353553385 : f32
    %183 = vector.broadcast %cst_98 : f32 to vector<2x8x8xf32>
    %184 = arith.mulf %182, %183 : vector<2x8x8xf32>
    %cst_99 = arith.constant dense<0xFF800000> : vector<2x8xf32>
    %185 = vector.multi_reduction <maximumf>, %184, %cst_99 [2] : vector<2x8x8xf32> to vector<2x8xf32>
    %186 = vector.shape_cast %185 : vector<2x8xf32> to vector<2x8x1xf32>
    %187 = vector.broadcast %186 : vector<2x8x1xf32> to vector<2x8x8xf32>
    %188 = arith.subf %184, %187 : vector<2x8x8xf32>
    %189 = math.exp %188 : vector<2x8x8xf32>
    %cst_100 = arith.constant dense<0.000000e+00> : vector<2x8xf32>
    %190 = vector.multi_reduction <add>, %189, %cst_100 [2] : vector<2x8x8xf32> to vector<2x8xf32>
    %191 = vector.shape_cast %190 : vector<2x8xf32> to vector<2x8x1xf32>
    %192 = tpu.reciprocal %191 {approx = true} : vector<2x8x1xf32> -> vector<2x8x1xf32>
    %193 = vector.broadcast %192 : vector<2x8x1xf32> to vector<2x8x8xf32>
    %194 = arith.mulf %189, %193 : vector<2x8x8xf32>
    %195 = arith.truncf %194 : vector<2x8x8xf32> to vector<2x8x8xbf16>
    "tpu.trace_start"() <{level = 10 : i32, message = "bqk,bkd->bqd"}> : () -> ()
    %cst_101 = arith.constant dense<0.000000e+00> : vector<2x8x8xf32>
    %196 = tpu.matmul %195, %181, %cst_101 {dimension_numbers = #tpu.dot_dimension_numbers<[2], [1], [1], [2], [0, 0, 0, 1, 1, 2], [0], [0]>} : vector<2x8x8xbf16>, vector<2x8x8xbf16>, vector<2x8x8xf32> -> vector<2x8x8xf32>
    "tpu.trace_stop"() : () -> ()
    %197 = vector.shape_cast %196 : vector<2x8x8xf32> to vector<16x8xf32>
    %198 = arith.truncf %197 : vector<16x8xf32> to vector<16x8xbf16>
    %c0_102 = arith.constant 0 : index
    %c3_103 = arith.constant 3 : index
    %c0_104 = arith.constant 0 : index
    %c0_105 = arith.constant 0 : index
    %199 = vector.load %arg6[%c0_102, %c3_103, %c0_104, %c0_105] : memref<1x4x8x32xbf16, #tpu.memory_space<vmem>>, vector<1x1x8x32xbf16>
    %200 = vector.shape_cast %199 : vector<1x1x8x32xbf16> to vector<8x32xbf16>
    %cst_106 = arith.constant dense<0.000000e+00> : vector<16x32xf32>
    %201 = tpu.matmul %198, %200, %cst_106 {dimension_numbers = #tpu.dot_dimension_numbers<[1], [0], [0], [1], [0, 0, 1, 1], [], []>} : vector<16x8xbf16>, vector<8x32xbf16>, vector<16x32xf32> -> vector<16x32xf32>
    %202 = arith.addf %154, %201 : vector<16x32xf32>
    %203 = vector.extract_strided_slice %9 {offsets = [0, 0], sizes = [1, 32], strides = [1, 1]} : vector<6x32xf32> to vector<1x32xf32>
    %204 = vector.broadcast %203 : vector<1x32xf32> to vector<16x32xf32>
    %205 = arith.addf %202, %204 : vector<16x32xf32>
    %206 = arith.addf %4, %205 : vector<16x32xf32>
    %cst_107 = arith.constant dense<0.000000e+00> : vector<16xf32>
    %207 = vector.multi_reduction <add>, %206, %cst_107 [1] : vector<16x32xf32> to vector<16xf32>
    %208 = vector.shape_cast %207 : vector<16xf32> to vector<16x1xf32>
    %cst_108 = arith.constant 3.200000e+01 : f32
    %209 = vector.broadcast %cst_108 : f32 to vector<16x1xf32>
    %210 = arith.divf %208, %209 : vector<16x1xf32>
    %211 = vector.broadcast %210 : vector<16x1xf32> to vector<16x32xf32>
    %212 = arith.subf %206, %211 : vector<16x32xf32>
    %213 = arith.mulf %212, %212 : vector<16x32xf32>
    %cst_109 = arith.constant dense<0.000000e+00> : vector<16xf32>
    %214 = vector.multi_reduction <add>, %213, %cst_109 [1] : vector<16x32xf32> to vector<16xf32>
    %215 = vector.shape_cast %214 : vector<16xf32> to vector<16x1xf32>
    %cst_110 = arith.constant 3.200000e+01 : f32
    %216 = vector.broadcast %cst_110 : f32 to vector<16x1xf32>
    %217 = arith.divf %215, %216 : vector<16x1xf32>
    %218 = vector.broadcast %210 : vector<16x1xf32> to vector<16x32xf32>
    %219 = arith.subf %206, %218 : vector<16x32xf32>
    %cst_111 = arith.constant 9.99999974E-6 : f32
    %220 = vector.broadcast %cst_111 : f32 to vector<16x1xf32>
    %221 = arith.addf %217, %220 : vector<16x1xf32>
    %222 = math.rsqrt %221 : vector<16x1xf32>
    %223 = vector.broadcast %222 : vector<16x1xf32> to vector<16x32xf32>
    %224 = arith.mulf %219, %223 : vector<16x32xf32>
    %225 = vector.extract_strided_slice %9 {offsets = [1, 0], sizes = [1, 32], strides = [1, 1]} : vector<6x32xf32> to vector<1x32xf32>
    %226 = vector.broadcast %225 : vector<1x32xf32> to vector<16x32xf32>
    %227 = arith.mulf %224, %226 : vector<16x32xf32>
    %228 = vector.extract_strided_slice %9 {offsets = [2, 0], sizes = [1, 32], strides = [1, 1]} : vector<6x32xf32> to vector<1x32xf32>
    %229 = vector.broadcast %228 : vector<1x32xf32> to vector<16x32xf32>
    %230 = arith.addf %227, %229 : vector<16x32xf32>
    %231 = arith.truncf %230 : vector<16x32xf32> to vector<16x32xbf16>
    %c0_112 = arith.constant 0 : index
    %c0_113 = arith.constant 0 : index
    %c0_114 = arith.constant 0 : index
    %232 = vector.load %arg7[%c0_112, %c0_113, %c0_114] : memref<1x32x64xbf16, #tpu.memory_space<vmem>>, vector<1x32x64xbf16>
    %233 = vector.shape_cast %232 : vector<1x32x64xbf16> to vector<32x64xbf16>
    %cst_115 = arith.constant dense<0.000000e+00> : vector<16x64xf32>
    %234 = tpu.matmul %231, %233, %cst_115 {dimension_numbers = #tpu.dot_dimension_numbers<[1], [0], [0], [1], [0, 0, 1, 1], [], []>} : vector<16x32xbf16>, vector<32x64xbf16>, vector<16x64xf32> -> vector<16x64xf32>
    %c0_116 = arith.constant 0 : index
    %c0_117 = arith.constant 0 : index
    %c0_118 = arith.constant 0 : index
    %235 = vector.load %arg11[%c0_116, %c0_117, %c0_118] : memref<1x1x64xf32, #tpu.memory_space<vmem>>, vector<1x1x64xf32>
    %236 = vector.shape_cast %235 : vector<1x1x64xf32> to vector<1x64xf32>
    %237 = vector.broadcast %236 : vector<1x64xf32> to vector<16x64xf32>
    %238 = arith.addf %234, %237 : vector<16x64xf32>
    %cst_119 = arith.constant 0.000000e+00 : f32
    %239 = vector.broadcast %cst_119 : f32 to vector<16x64xf32>
    %240 = arith.maximumf %238, %239 : vector<16x64xf32>
    %241 = arith.truncf %240 : vector<16x64xf32> to vector<16x64xbf16>
    %c0_120 = arith.constant 0 : index
    %c0_121 = arith.constant 0 : index
    %c0_122 = arith.constant 0 : index
    %242 = vector.load %arg8[%c0_120, %c0_121, %c0_122] : memref<1x64x32xbf16, #tpu.memory_space<vmem>>, vector<1x64x32xbf16>
    %243 = vector.shape_cast %242 : vector<1x64x32xbf16> to vector<64x32xbf16>
    %cst_123 = arith.constant dense<0.000000e+00> : vector<16x32xf32>
    %244 = tpu.matmul %241, %243, %cst_123 {dimension_numbers = #tpu.dot_dimension_numbers<[1], [0], [0], [1], [0, 0, 1, 1], [], []>} : vector<16x64xbf16>, vector<64x32xbf16>, vector<16x32xf32> -> vector<16x32xf32>
    %245 = vector.extract_strided_slice %9 {offsets = [3, 0], sizes = [1, 32], strides = [1, 1]} : vector<6x32xf32> to vector<1x32xf32>
    %246 = vector.broadcast %245 : vector<1x32xf32> to vector<16x32xf32>
    %247 = arith.addf %244, %246 : vector<16x32xf32>
    %248 = arith.addf %230, %247 : vector<16x32xf32>
    %cst_124 = arith.constant dense<0.000000e+00> : vector<16xf32>
    %249 = vector.multi_reduction <add>, %248, %cst_124 [1] : vector<16x32xf32> to vector<16xf32>
    %250 = vector.shape_cast %249 : vector<16xf32> to vector<16x1xf32>
    %cst_125 = arith.constant 3.200000e+01 : f32
    %251 = vector.broadcast %cst_125 : f32 to vector<16x1xf32>
    %252 = arith.divf %250, %251 : vector<16x1xf32>
    %253 = vector.broadcast %252 : vector<16x1xf32> to vector<16x32xf32>
    %254 = arith.subf %248, %253 : vector<16x32xf32>
    %255 = arith.mulf %254, %254 : vector<16x32xf32>
    %cst_126 = arith.constant dense<0.000000e+00> : vector<16xf32>
    %256 = vector.multi_reduction <add>, %255, %cst_126 [1] : vector<16x32xf32> to vector<16xf32>
    %257 = vector.shape_cast %256 : vector<16xf32> to vector<16x1xf32>
    %cst_127 = arith.constant 3.200000e+01 : f32
    %258 = vector.broadcast %cst_127 : f32 to vector<16x1xf32>
    %259 = arith.divf %257, %258 : vector<16x1xf32>
    %260 = vector.broadcast %252 : vector<16x1xf32> to vector<16x32xf32>
    %261 = arith.subf %248, %260 : vector<16x32xf32>
    %cst_128 = arith.constant 9.99999974E-6 : f32
    %262 = vector.broadcast %cst_128 : f32 to vector<16x1xf32>
    %263 = arith.addf %259, %262 : vector<16x1xf32>
    %264 = math.rsqrt %263 : vector<16x1xf32>
    %265 = vector.broadcast %264 : vector<16x1xf32> to vector<16x32xf32>
    %266 = arith.mulf %261, %265 : vector<16x32xf32>
    %267 = vector.extract_strided_slice %9 {offsets = [4, 0], sizes = [1, 32], strides = [1, 1]} : vector<6x32xf32> to vector<1x32xf32>
    %268 = vector.broadcast %267 : vector<1x32xf32> to vector<16x32xf32>
    %269 = arith.mulf %266, %268 : vector<16x32xf32>
    %270 = vector.extract_strided_slice %9 {offsets = [5, 0], sizes = [1, 32], strides = [1, 1]} : vector<6x32xf32> to vector<1x32xf32>
    %271 = vector.broadcast %270 : vector<1x32xf32> to vector<16x32xf32>
    %272 = arith.addf %269, %271 : vector<16x32xf32>
    %273 = vector.shape_cast %272 : vector<16x32xf32> to vector<2x8x32xf32>
    %c0_129 = arith.constant 0 : index
    %c0_130 = arith.constant 0 : index
    %c0_131 = arith.constant 0 : index
    %274 = vector.load %arg17[%c0_129, %c0_130, %c0_131] : memref<2x8x32xf32, #tpu.memory_space<vmem>>, vector<2x8x32xf32>
    tpu.vector_store %arg17[%c0_129, %c0_130, %c0_131], %273 {strides = array<i32>} : memref<2x8x32xf32, #tpu.memory_space<vmem>>, vector<2x8x32xf32>,
    %c1_i32 = arith.constant 1 : i32
    %275 = arith.cmpi eq, %arg1, %c1_i32 : i32
    %276 = arith.extui %275 : i1 to i32
    %c0_i32_132 = arith.constant 0 : i32
    %277 = arith.cmpi ne, %276, %c0_i32_132 : i32
    scf.if %277 {
      %278 = vector.shape_cast %272 : vector<16x32xf32> to vector<2x8x32xf32>
      %279 = vector.extract_strided_slice %278 {offsets = [0, 0, 0], sizes = [2, 1, 32], strides = [1, 1, 1]} : vector<2x8x32xf32> to vector<2x1x32xf32>
      %280 = vector.shape_cast %279 : vector<2x1x32xf32> to vector<2x32xf32>
      %281 = arith.truncf %280 : vector<2x32xf32> to vector<2x32xbf16>
      %c0_133 = arith.constant 0 : index
      %c0_134 = arith.constant 0 : index
      %282 = vector.load %arg12[%c0_133, %c0_134] : memref<32x32xbf16, #tpu.memory_space<vmem>>, vector<32x32xbf16>
      %cst_135 = arith.constant dense<0.000000e+00> : vector<2x32xf32>
      %283 = tpu.matmul %281, %282, %cst_135 {dimension_numbers = #tpu.dot_dimension_numbers<[1], [0], [0], [1], [0, 0, 1, 1], [], []>} : vector<2x32xbf16>, vector<32x32xbf16>, vector<2x32xf32> -> vector<2x32xf32>
      %c0_136 = arith.constant 0 : index
      %c0_137 = arith.constant 0 : index
      %284 = vector.load %arg13[%c0_136, %c0_137] : memref<1x32xf32, #tpu.memory_space<vmem>>, vector<1x32xf32>
      %285 = vector.broadcast %284 : vector<1x32xf32> to vector<2x32xf32>
      %286 = arith.addf %283, %285 : vector<2x32xf32>
      %287 = vector.extract_strided_slice %286 {offsets = [0, 0], sizes = [2, 16], strides = [1, 1]} : vector<2x32xf32> to vector<2x16xf32>
      %288 = vector.extract_strided_slice %286 {offsets = [0, 16], sizes = [2, 16], strides = [1, 1]} : vector<2x32xf32> to vector<2x16xf32>
      %289 = arith.mulf %287, %287 : vector<2x16xf32>
      %290 = math.exp %288 : vector<2x16xf32>
      %291 = arith.addf %289, %290 : vector<2x16xf32>
      %292 = arith.subf %291, %288 : vector<2x16xf32>
      %cst_138 = arith.constant 1.000000e+00 : f32
      %293 = vector.broadcast %cst_138 : f32 to vector<2x16xf32>
      %294 = arith.subf %292, %293 : vector<2x16xf32>
      %cst_139 = arith.constant dense<0.000000e+00> : vector<2xf32>
      %295 = vector.multi_reduction <add>, %294, %cst_139 [1] : vector<2x16xf32> to vector<2xf32>
      %296 = vector.shape_cast %295 : vector<2xf32> to vector<2x1xf32>
      %cst_140 = arith.constant 5.000000e-01 : f32
      %297 = vector.broadcast %cst_140 : f32 to vector<2x1xf32>
      %298 = arith.mulf %297, %296 : vector<2x1xf32>
      %c0_141 = arith.constant 0 : index
      %c0_142 = arith.constant 0 : index
      %299 = vector.load %arg16[%c0_141, %c0_142] : memref<2x1xf32, #tpu.memory_space<vmem>>, vector<2x1xf32>
      tpu.vector_store %arg16[%c0_141, %c0_142], %298 {strides = array<i32>} : memref<2x1xf32, #tpu.memory_space<vmem>>, vector<2x1xf32>,
      %c0_143 = arith.constant 0 : index
      %c0_144 = arith.constant 0 : index
      %300 = vector.load %arg14[%c0_143, %c0_144] : memref<2x16xf32, #tpu.memory_space<vmem>>, vector<2x16xf32>
      %cst_145 = arith.constant 5.000000e-01 : f32
      %301 = vector.broadcast %cst_145 : f32 to vector<2x16xf32>
      %302 = arith.mulf %301, %288 : vector<2x16xf32>
      %303 = math.exp %302 : vector<2x16xf32>
      %304 = arith.mulf %300, %303 : vector<2x16xf32>
      %305 = arith.addf %304, %287 : vector<2x16xf32>
      %306 = tpu.concatenate %305, %287, %288 in 1 : vector<2x16xf32>, vector<2x16xf32>, vector<2x16xf32> -> vector<2x48xf32>
      %c0_146 = arith.constant 0 : index
      %c0_147 = arith.constant 0 : index
      %307 = vector.load %arg15[%c0_146, %c0_147] : memref<2x48xf32, #tpu.memory_space<vmem>>, vector<2x48xf32>
      tpu.vector_store %arg15[%c0_146, %c0_147], %306 {strides = array<i32>} : memref<2x48xf32, #tpu.memory_space<vmem>>, vector<2x48xf32>,
    } else {
    }
    return
  }
  func.func @transform_0(%arg0: i32, %arg1: i32) -> (i32, i32, i32) {
    %c0_i32 = arith.constant 0 : i32
    %c0_i32_0 = arith.constant 0 : i32
    %c0_i32_1 = arith.constant 0 : i32
    return %arg0, %c0_i32, %c0_i32_0 : i32, i32, i32
  }
  func.func @transform_1(%arg0: i32, %arg1: i32) -> (i32, i32, i32, i32) {
    %c0_i32 = arith.constant 0 : i32
    %c0_i32_0 = arith.constant 0 : i32
    %c0_i32_1 = arith.constant 0 : i32
    %c0_i32_2 = arith.constant 0 : i32
    return %arg1, %c0_i32, %c0_i32_0, %c0_i32_1 : i32, i32, i32, i32
  }
  func.func @transform_2(%arg0: i32, %arg1: i32) -> (i32, i32, i32, i32) {
    %c0_i32 = arith.constant 0 : i32
    %c0_i32_0 = arith.constant 0 : i32
    %c0_i32_1 = arith.constant 0 : i32
    %c0_i32_2 = arith.constant 0 : i32
    return %arg1, %c0_i32, %c0_i32_0, %c0_i32_1 : i32, i32, i32, i32
  }
  func.func @transform_3(%arg0: i32, %arg1: i32) -> (i32, i32, i32, i32) {
    %c0_i32 = arith.constant 0 : i32
    %c0_i32_0 = arith.constant 0 : i32
    %c0_i32_1 = arith.constant 0 : i32
    %c0_i32_2 = arith.constant 0 : i32
    return %arg1, %c0_i32, %c0_i32_0, %c0_i32_1 : i32, i32, i32, i32
  }
  func.func @transform_4(%arg0: i32, %arg1: i32) -> (i32, i32, i32, i32) {
    %c0_i32 = arith.constant 0 : i32
    %c0_i32_0 = arith.constant 0 : i32
    %c0_i32_1 = arith.constant 0 : i32
    %c0_i32_2 = arith.constant 0 : i32
    return %arg1, %c0_i32, %c0_i32_0, %c0_i32_1 : i32, i32, i32, i32
  }
  func.func @transform_5(%arg0: i32, %arg1: i32) -> (i32, i32, i32) {
    %c0_i32 = arith.constant 0 : i32
    %c0_i32_0 = arith.constant 0 : i32
    %c0_i32_1 = arith.constant 0 : i32
    return %arg1, %c0_i32, %c0_i32_0 : i32, i32, i32
  }
  func.func @transform_6(%arg0: i32, %arg1: i32) -> (i32, i32, i32) {
    %c0_i32 = arith.constant 0 : i32
    %c0_i32_0 = arith.constant 0 : i32
    %c0_i32_1 = arith.constant 0 : i32
    return %arg1, %c0_i32, %c0_i32_0 : i32, i32, i32
  }
  func.func @transform_7(%arg0: i32, %arg1: i32) -> (i32, i32, i32, i32) {
    %c0_i32 = arith.constant 0 : i32
    %c0_i32_0 = arith.constant 0 : i32
    %c0_i32_1 = arith.constant 0 : i32
    %c0_i32_2 = arith.constant 0 : i32
    return %arg1, %c0_i32, %c0_i32_0, %c0_i32_1 : i32, i32, i32, i32
  }
  func.func @transform_8(%arg0: i32, %arg1: i32) -> (i32, i32, i32) {
    %c0_i32 = arith.constant 0 : i32
    %c0_i32_0 = arith.constant 0 : i32
    %c0_i32_1 = arith.constant 0 : i32
    return %arg1, %c0_i32, %c0_i32_0 : i32, i32, i32
  }
  func.func @transform_9(%arg0: i32, %arg1: i32) -> (i32, i32, i32) {
    %c0_i32 = arith.constant 0 : i32
    %c0_i32_0 = arith.constant 0 : i32
    %c0_i32_1 = arith.constant 0 : i32
    return %arg1, %c0_i32, %c0_i32_0 : i32, i32, i32
  }
  func.func @transform_10(%arg0: i32, %arg1: i32) -> (i32, i32) {
    %c0_i32 = arith.constant 0 : i32
    %c0_i32_0 = arith.constant 0 : i32
    %c0_i32_1 = arith.constant 0 : i32
    return %c0_i32, %c0_i32_0 : i32, i32
  }
  func.func @transform_11(%arg0: i32, %arg1: i32) -> (i32, i32) {
    %c0_i32 = arith.constant 0 : i32
    %c0_i32_0 = arith.constant 0 : i32
    %c0_i32_1 = arith.constant 0 : i32
    return %c0_i32, %c0_i32_0 : i32, i32
  }
  func.func @transform_12(%arg0: i32, %arg1: i32) -> (i32, i32) {
    %c0_i32 = arith.constant 0 : i32
    %c0_i32_0 = arith.constant 0 : i32
    return %arg0, %c0_i32 : i32, i32
  }
  func.func @transform_13(%arg0: i32, %arg1: i32) -> (i32, i32) {
    %c0_i32 = arith.constant 0 : i32
    %c0_i32_0 = arith.constant 0 : i32
    return %arg0, %c0_i32 : i32, i32
  }
  func.func @transform_14(%arg0: i32, %arg1: i32) -> (i32, i32) {
    %c0_i32 = arith.constant 0 : i32
    %c0_i32_0 = arith.constant 0 : i32
    return %arg0, %c0_i32 : i32, i32
  }
}

</mosaic_0001>

<llo_original>
// kernel: tpu_custom_call.1
$region0: #{tpu_custom_call.1}
  #allocation0 [shape = 'u32[]', space=smem, size = 0x4, offset = 0x4, fixed_abs, tag = 'smem constant byte address 0x4 - core index']
  #allocation1 [shape = 'u32[72,128]{1,0:T(1,128)}', space=vmem, size = 0x9000, scoped, tag = 'internal scratch']
  #allocation2 [shape = 'f32[2,8,32]{2,1,0:T(8,128)}', space=vmem, size = 0x2000, scoped, tag = 'scratch operand']
  %s0 = inlined_call_operand.vmem [shape: f32[2,8,32], index: 0, kind: input, shape index: {}]
  %s1 = inlined_call_operand.vmem [shape: bf16[2,4,32,8], index: 1, kind: input, shape index: {}]
  %s2 = inlined_call_operand.vmem [shape: bf16[2,4,32,8], index: 2, kind: input, shape index: {}]
  %s3 = inlined_call_operand.vmem [shape: bf16[2,4,32,8], index: 3, kind: input, shape index: {}]
  %s4 = inlined_call_operand.vmem [shape: bf16[2,4,8,32], index: 4, kind: input, shape index: {}]
  %s5 = inlined_call_operand.vmem [shape: bf16[2,32,64], index: 5, kind: input, shape index: {}]
  %s6 = inlined_call_operand.vmem [shape: bf16[2,64,32], index: 6, kind: input, shape index: {}]
  %s7 = inlined_call_operand.vmem [shape: f32[2,3,4,8], index: 7, kind: input, shape index: {}]
  %s8 = inlined_call_operand.vmem [shape: f32[2,6,32], index: 8, kind: input, shape index: {}]
  %s9 = inlined_call_operand.vmem [shape: f32[2,1,64], index: 9, kind: input, shape index: {}]
  %s10 = inlined_call_operand.vmem [shape: bf16[32,32], index: 10, kind: input, shape index: {}]
  %s11 = inlined_call_operand.vmem [shape: f32[1,32], index: 11, kind: input, shape index: {}]
  %s12 = inlined_call_operand.vmem [shape: f32[2,16], index: 12, kind: input, shape index: {}]
  %s13 = inlined_call_operand.hbm [shape: f32[2,48], index: 13, kind: output, shape index: {0}]
  %s14 = inlined_call_operand.vmem [shape: f32[2,1], index: 14, kind: output, shape index: {1}]
  %15 = xla_tuple %s13, %s14
  %s16 = sld [smem:[#allocation0]]
  $region101: #{tpu_custom_call.1} parent=0
    _
  %s18 = ssub.s32 1, %s16
  %s19 = scalar_select 0, %s18, %s16
  $region1: #{tpu_custom_call.1} parent=0
    #allocation3 [shape = 'u8[1024]{0}', space=vmem, size = 0x400, scoped, tag = 'output window, operand 0, single buffered']
    #allocation4 [shape = 's32[2]{0}', space=sflag, size = 0x8, scoped, tag = 'scoped memory for tpu_custom_call.1']
    %20 = vsyncpa [#allocation4], 0
    loop: start=0, step=1, limit=4
    $region2: #{tpu_custom_call.1} parent=1 // loop_pre_header
      _
    $region3: #{tpu_custom_call.1} parent=1 // loop_header
      %s22 = sphi 0, %s26
      %p23 = scmp.ge.s32.totalorder %s22, 4
      %s29 = sphi 0, %s41
      %s30 = sphi 0, %s37
      %s31 = sphi 0, %s29
      %s32 = sphi 0, %s30
      %s33 = sphi 0, %s31
      %s34 = sphi 0, %s32
      %s44 = sphi 0, %s46
      %s47 = sphi 0, %s44
      %s48 = sphi 0, %s47
      %s64 = sphi 0, %s48
      %s70 = sphi 0, %s72
      %s73 = sphi 0, %s70
      %s74 = sphi 0, %s73
      %s90 = sphi 0, %s74
      %s96 = sphi 0, %s98
      %s99 = sphi 0, %s96
      %s100 = sphi 0, %s99
      %s116 = sphi 0, %s100
      %s122 = sphi 0, %s124
      %s125 = sphi 0, %s122
      %s126 = sphi 0, %s125
      %s142 = sphi 0, %s126
      %s148 = sphi 0, %s150
      %s151 = sphi 0, %s148
      %s152 = sphi 0, %s151
      %s168 = sphi 0, %s152
      %s174 = sphi 0, %s176
      %s177 = sphi 0, %s174
      %s178 = sphi 0, %s177
      %s194 = sphi 0, %s178
      %s200 = sphi 0, %s202
      %s203 = sphi 0, %s200
      %s204 = sphi 0, %s203
      %s220 = sphi 0, %s204
      %s226 = sphi 0, %s228
      %s229 = sphi 0, %s226
      %s230 = sphi 0, %s229
      %s246 = sphi 0, %s230
      %s252 = sphi 0, %s254
      %s255 = sphi 0, %s252
      %s256 = sphi 0, %s255
      %s272 = sphi 0, %s256
      %s278 = sphi 0, %s280
      %s281 = sphi 0, %s278
      %s282 = sphi 0, %s281
      %s298 = sphi 0, %s282
      %s302 = sphi 0, %s302
      %s304 = sphi 0, %s302
      %s305 = sphi 0, %s304
      %s319 = sphi 0, %s305
      %s323 = sphi 0, %s323
      %s325 = sphi 0, %s323
      %s326 = sphi 0, %s325
      %s340 = sphi 0, %s326
      %s346 = sphi 0, %s348
      %s349 = sphi 0, %s346
      %s350 = sphi 0, %s349
      %s366 = sphi 0, %s350
      %s372 = sphi 0, %s374
      %s375 = sphi 0, %s372
      %s376 = sphi 0, %s375
      %s392 = sphi 0, %s376
      %s398 = sphi 0, %s400
      %s401 = sphi 0, %s398
      %s402 = sphi 0, %s401
      %s418 = sphi 0, %s402
    $region4: #{tpu_custom_call.1} parent=1 // loop_header_branch
      %25 = sbr.rel (%p23) target = $region8
    $region5: #{tpu_custom_call.1} parent=1 // loop_body
      %s27 = ssub.s32 %s22, 1
      %s28 = ssub.s32 %s22, 2
      %s35 = sadd.s32 1, %s30
      %p36 = scmp.ge.s32.totalorder %s35, 2
      %s37 = scalar_select %p36, 0, %s35
      %s38 = sadd.s32 1, %s29
      %s39 = scalar_select %p36, %s38, %s29
      %p40 = scmp.ge.s32.totalorder %s39, 1
      %s41 = scalar_select %p40, 0, %s39
      %s42 = ssub.s32 %s29, %s41
      %p43 = scmp.eq.s32.totalorder %s42, 0
      %s45 = sadd.s32 %s44, 1
      %s46 = scalar_select %p43, %s44, %s45
      %p49 = pneg %p43
      %p50 = scmp.eq.s32.totalorder %s22, 1
      %p51 = por %p49, %p50
      %p52 = scmp.ne.s32.totalorder %s44, %s47
      %p53 = scmp.eq.s32.totalorder %s22, 0
      %p54 = por %p52, %p53
      %p55 = scmp.ne.s32.totalorder %s44, %s47
      %p56 = scmp.eq.s32.totalorder %s27, 1
      %p57 = por %p55, %p56
      %p58 = scmp.ne.s32.totalorder %s47, %s48
      %p59 = scmp.eq.s32.totalorder %s27, 0
      %p60 = por %p58, %p59
      %p61 = scmp.ne.s32.totalorder %s47, %s48
      %p62 = scmp.eq.s32.totalorder %s28, 1
      %p63 = por %p61, %p62
      %p65 = scmp.ne.s32.totalorder %s48, %s64
      %p66 = scmp.eq.s32.totalorder %s28, 0
      %p67 = por %p65, %p66
      %s68 = ssub.s32 %s30, %s37
      %p69 = scmp.eq.s32.totalorder %s68, 0
      %s71 = sadd.s32 %s70, 1
      %s72 = scalar_select %p69, %s70, %s71
      %p75 = pneg %p69
      %p76 = scmp.eq.s32.totalorder %s22, 1
      %p77 = por %p75, %p76
      %p78 = scmp.ne.s32.totalorder %s70, %s73
      %p79 = scmp.eq.s32.totalorder %s22, 0
      %p80 = por %p78, %p79
      %p81 = scmp.ne.s32.totalorder %s70, %s73
      %p82 = scmp.eq.s32.totalorder %s27, 1
      %p83 = por %p81, %p82
      %p84 = scmp.ne.s32.totalorder %s73, %s74
      %p85 = scmp.eq.s32.totalorder %s27, 0
      %p86 = por %p84, %p85
      %p87 = scmp.ne.s32.totalorder %s73, %s74
      %p88 = scmp.eq.s32.totalorder %s28, 1
      %p89 = por %p87, %p88
      %p91 = scmp.ne.s32.totalorder %s74, %s90
      %p92 = scmp.eq.s32.totalorder %s28, 0
      %p93 = por %p91, %p92
      %s94 = ssub.s32 %s30, %s37
      %p95 = scmp.eq.s32.totalorder %s94, 0
      %s97 = sadd.s32 %s96, 1
      %s98 = scalar_select %p95, %s96, %s97
      %p101 = pneg %p95
      %p102 = scmp.eq.s32.totalorder %s22, 1
      %p103 = por %p101, %p102
      %p104 = scmp.ne.s32.totalorder %s96, %s99
      %p105 = scmp.eq.s32.totalorder %s22, 0
      %p106 = por %p104, %p105
      %p107 = scmp.ne.s32.totalorder %s96, %s99
      %p108 = scmp.eq.s32.totalorder %s27, 1
      %p109 = por %p107, %p108
      %p110 = scmp.ne.s32.totalorder %s99, %s100
      %p111 = scmp.eq.s32.totalorder %s27, 0
      %p112 = por %p110, %p111
      %p113 = scmp.ne.s32.totalorder %s99, %s100
      %p114 = scmp.eq.s32.totalorder %s28, 1
      %p115 = por %p113, %p114
      %p117 = scmp.ne.s32.totalorder %s100, %s116
      %p118 = scmp.eq.s32.totalorder %s28, 0
      %p119 = por %p117, %p118
      %s120 = ssub.s32 %s30, %s37
      %p121 = scmp.eq.s32.totalorder %s120, 0
      %s123 = sadd.s32 %s122, 1
      %s124 = scalar_select %p121, %s122, %s123
      %p127 = pneg %p121
      %p128 = scmp.eq.s32.totalorder %s22, 1
      %p129 = por %p127, %p128
      %p130 = scmp.ne.s32.totalorder %s122, %s125
      %p131 = scmp.eq.s32.totalorder %s22, 0
      %p132 = por %p130, %p131
      %p133 = scmp.ne.s32.totalorder %s122, %s125
      %p134 = scmp.eq.s32.totalorder %s27, 1
      %p135 = por %p133, %p134
      %p136 = scmp.ne.s32.totalorder %s125, %s126
      %p137 = scmp.eq.s32.totalorder %s27, 0
      %p138 = por %p136, %p137
      %p139 = scmp.ne.s32.totalorder %s125, %s126
      %p140 = scmp.eq.s32.totalorder %s28, 1
      %p141 = por %p139, %p140
      %p143 = scmp.ne.s32.totalorder %s126, %s142
      %p144 = scmp.eq.s32.totalorder %s28, 0
      %p145 = por %p143, %p144
      %s146 = ssub.s32 %s30, %s37
      %p147 = scmp.eq.s32.totalorder %s146, 0
      %s149 = sadd.s32 %s148, 1
      %s150 = scalar_select %p147, %s148, %s149
      %p153 = pneg %p147
      %p154 = scmp.eq.s32.totalorder %s22, 1
      %p155 = por %p153, %p154
      %p156 = scmp.ne.s32.totalorder %s148, %s151
      %p157 = scmp.eq.s32.totalorder %s22, 0
      %p158 = por %p156, %p157
      %p159 = scmp.ne.s32.totalorder %s148, %s151
      %p160 = scmp.eq.s32.totalorder %s27, 1
      %p161 = por %p159, %p160
      %p162 = scmp.ne.s32.totalorder %s151, %s152
      %p163 = scmp.eq.s32.totalorder %s27, 0
      %p164 = por %p162, %p163
      %p165 = scmp.ne.s32.totalorder %s151, %s152
      %p166 = scmp.eq.s32.totalorder %s28, 1
      %p167 = por %p165, %p166
      %p169 = scmp.ne.s32.totalorder %s152, %s168
      %p170 = scmp.eq.s32.totalorder %s28, 0
      %p171 = por %p169, %p170
      %s172 = ssub.s32 %s30, %s37
      %p173 = scmp.eq.s32.totalorder %s172, 0
      %s175 = sadd.s32 %s174, 1
      %s176 = scalar_select %p173, %s174, %s175
      %p179 = pneg %p173
      %p180 = scmp.eq.s32.totalorder %s22, 1
      %p181 = por %p179, %p180
      %p182 = scmp.ne.s32.totalorder %s174, %s177
      %p183 = scmp.eq.s32.totalorder %s22, 0
      %p184 = por %p182, %p183
      %p185 = scmp.ne.s32.totalorder %s174, %s177
      %p186 = scmp.eq.s32.totalorder %s27, 1
      %p187 = por %p185, %p186
      %p188 = scmp.ne.s32.totalorder %s177, %s178
      %p189 = scmp.eq.s32.totalorder %s27, 0
      %p190 = por %p188, %p189
      %p191 = scmp.ne.s32.totalorder %s177, %s178
      %p192 = scmp.eq.s32.totalorder %s28, 1
      %p193 = por %p191, %p192
      %p195 = scmp.ne.s32.totalorder %s178, %s194
      %p196 = scmp.eq.s32.totalorder %s28, 0
      %p197 = por %p195, %p196
      %s198 = ssub.s32 %s30, %s37
      %p199 = scmp.eq.s32.totalorder %s198, 0
      %s201 = sadd.s32 %s200, 1
      %s202 = scalar_select %p199, %s200, %s201
      %p205 = pneg %p199
      %p206 = scmp.eq.s32.totalorder %s22, 1
      %p207 = por %p205, %p206
      %p208 = scmp.ne.s32.totalorder %s200, %s203
      %p209 = scmp.eq.s32.totalorder %s22, 0
      %p210 = por %p208, %p209
      %p211 = scmp.ne.s32.totalorder %s200, %s203
      %p212 = scmp.eq.s32.totalorder %s27, 1
      %p213 = por %p211, %p212
      %p214 = scmp.ne.s32.totalorder %s203, %s204
      %p215 = scmp.eq.s32.totalorder %s27, 0
      %p216 = por %p214, %p215
      %p217 = scmp.ne.s32.totalorder %s203, %s204
      %p218 = scmp.eq.s32.totalorder %s28, 1
      %p219 = por %p217, %p218
      %p221 = scmp.ne.s32.totalorder %s204, %s220
      %p222 = scmp.eq.s32.totalorder %s28, 0
      %p223 = por %p221, %p222
      %s224 = ssub.s32 %s30, %s37
      %p225 = scmp.eq.s32.totalorder %s224, 0
      %s227 = sadd.s32 %s226, 1
      %s228 = scalar_select %p225, %s226, %s227
      %p231 = pneg %p225
      %p232 = scmp.eq.s32.totalorder %s22, 1
      %p233 = por %p231, %p232
      %p234 = scmp.ne.s32.totalorder %s226, %s229
      %p235 = scmp.eq.s32.totalorder %s22, 0
      %p236 = por %p234, %p235
      %p237 = scmp.ne.s32.totalorder %s226, %s229
      %p238 = scmp.eq.s32.totalorder %s27, 1
      %p239 = por %p237, %p238
      %p240 = scmp.ne.s32.totalorder %s229, %s230
      %p241 = scmp.eq.s32.totalorder %s27, 0
      %p242 = por %p240, %p241
      %p243 = scmp.ne.s32.totalorder %s229, %s230
      %p244 = scmp.eq.s32.totalorder %s28, 1
      %p245 = por %p243, %p244
      %p247 = scmp.ne.s32.totalorder %s230, %s246
      %p248 = scmp.eq.s32.totalorder %s28, 0
      %p249 = por %p247, %p248
      %s250 = ssub.s32 %s30, %s37
      %p251 = scmp.eq.s32.totalorder %s250, 0
      %s253 = sadd.s32 %s252, 1
      %s254 = scalar_select %p251, %s252, %s253
      %p257 = pneg %p251
      %p258 = scmp.eq.s32.totalorder %s22, 1
      %p259 = por %p257, %p258
      %p260 = scmp.ne.s32.totalorder %s252, %s255
      %p261 = scmp.eq.s32.totalorder %s22, 0
      %p262 = por %p260, %p261
      %p263 = scmp.ne.s32.totalorder %s252, %s255
      %p264 = scmp.eq.s32.totalorder %s27, 1
      %p265 = por %p263, %p264
      %p266 = scmp.ne.s32.totalorder %s255, %s256
      %p267 = scmp.eq.s32.totalorder %s27, 0
      %p268 = por %p266, %p267
      %p269 = scmp.ne.s32.totalorder %s255, %s256
      %p270 = scmp.eq.s32.totalorder %s28, 1
      %p271 = por %p269, %p270
      %p273 = scmp.ne.s32.totalorder %s256, %s272
      %p274 = scmp.eq.s32.totalorder %s28, 0
      %p275 = por %p273, %p274
      %s276 = ssub.s32 %s30, %s37
      %p277 = scmp.eq.s32.totalorder %s276, 0
      %s279 = sadd.s32 %s278, 1
      %s280 = scalar_select %p277, %s278, %s279
      %p283 = pneg %p277
      %p284 = scmp.eq.s32.totalorder %s22, 1
      %p285 = por %p283, %p284
      %p286 = scmp.ne.s32.totalorder %s278, %s281
      %p287 = scmp.eq.s32.totalorder %s22, 0
      %p288 = por %p286, %p287
      %p289 = scmp.ne.s32.totalorder %s278, %s281
      %p290 = scmp.eq.s32.totalorder %s27, 1
      %p291 = por %p289, %p290
      %p292 = scmp.ne.s32.totalorder %s281, %s282
      %p293 = scmp.eq.s32.totalorder %s27, 0
      %p294 = por %p292, %p293
      %p295 = scmp.ne.s32.totalorder %s281, %s282
      %p296 = scmp.eq.s32.totalorder %s28, 1
      %p297 = por %p295, %p296
      %p299 = scmp.ne.s32.totalorder %s282, %s298
      %p300 = scmp.eq.s32.totalorder %s28, 0
      %p301 = por %p299, %p300
      %s303 = sadd.s32 %s302, 1
      %p306 = scmp.eq.s32.totalorder %s22, 1
      %p307 = scmp.ne.s32.totalorder %s302, %s304
      %p308 = scmp.eq.s32.totalorder %s22, 0
      %p309 = por %p307, %p308
      %p310 = scmp.ne.s32.totalorder %s302, %s304
      %p311 = scmp.eq.s32.totalorder %s27, 1
      %p312 = por %p310, %p311
      %p313 = scmp.ne.s32.totalorder %s304, %s305
      %p314 = scmp.eq.s32.totalorder %s27, 0
      %p315 = por %p313, %p314
      %p316 = scmp.ne.s32.totalorder %s304, %s305
      %p317 = scmp.eq.s32.totalorder %s28, 1
      %p318 = por %p316, %p317
      %p320 = scmp.ne.s32.totalorder %s305, %s319
      %p321 = scmp.eq.s32.totalorder %s28, 0
      %p322 = por %p320, %p321
      %s324 = sadd.s32 %s323, 1
      %p327 = scmp.eq.s32.totalorder %s22, 1
      %p328 = scmp.ne.s32.totalorder %s323, %s325
      %p329 = scmp.eq.s32.totalorder %s22, 0
      %p330 = por %p328, %p329
      %p331 = scmp.ne.s32.totalorder %s323, %s325
      %p332 = scmp.eq.s32.totalorder %s27, 1
      %p333 = por %p331, %p332
      %p334 = scmp.ne.s32.totalorder %s325, %s326
      %p335 = scmp.eq.s32.totalorder %s27, 0
      %p336 = por %p334, %p335
      %p337 = scmp.ne.s32.totalorder %s325, %s326
      %p338 = scmp.eq.s32.totalorder %s28, 1
      %p339 = por %p337, %p338
      %p341 = scmp.ne.s32.totalorder %s326, %s340
      %p342 = scmp.eq.s32.totalorder %s28, 0
      %p343 = por %p341, %p342
      %s344 = ssub.s32 %s29, %s41
      %p345 = scmp.eq.s32.totalorder %s344, 0
      %s347 = sadd.s32 %s346, 1
      %s348 = scalar_select %p345, %s346, %s347
      %p351 = pneg %p345
      %p352 = scmp.eq.s32.totalorder %s22, 1
      %p353 = por %p351, %p352
      %p354 = scmp.ne.s32.totalorder %s346, %s349
      %p355 = scmp.eq.s32.totalorder %s22, 0
      %p356 = por %p354, %p355
      %p357 = scmp.ne.s32.totalorder %s346, %s349
      %p358 = scmp.eq.s32.totalorder %s27, 1
      %p359 = por %p357, %p358
      %p360 = scmp.ne.s32.totalorder %s349, %s350
      %p361 = scmp.eq.s32.totalorder %s27, 0
      %p362 = por %p360, %p361
      %p363 = scmp.ne.s32.totalorder %s349, %s350
      %p364 = scmp.eq.s32.totalorder %s28, 1
      %p365 = por %p363, %p364
      %p367 = scmp.ne.s32.totalorder %s350, %s366
      %p368 = scmp.eq.s32.totalorder %s28, 0
      %p369 = por %p367, %p368
      %s370 = ssub.s32 %s29, %s41
      %p371 = scmp.eq.s32.totalorder %s370, 0
      %s373 = sadd.s32 %s372, 1
      %s374 = scalar_select %p371, %s372, %s373
      %p377 = pneg %p371
      %p378 = scmp.eq.s32.totalorder %s22, 1
      %p379 = por %p377, %p378
      %p380 = scmp.ne.s32.totalorder %s372, %s375
      %p381 = scmp.eq.s32.totalorder %s22, 0
      %p382 = por %p380, %p381
      %p383 = scmp.ne.s32.totalorder %s372, %s375
      %p384 = scmp.eq.s32.totalorder %s27, 1
      %p385 = por %p383, %p384
      %p386 = scmp.ne.s32.totalorder %s375, %s376
      %p387 = scmp.eq.s32.totalorder %s27, 0
      %p388 = por %p386, %p387
      %p389 = scmp.ne.s32.totalorder %s375, %s376
      %p390 = scmp.eq.s32.totalorder %s28, 1
      %p391 = por %p389, %p390
      %p393 = scmp.ne.s32.totalorder %s376, %s392
      %p394 = scmp.eq.s32.totalorder %s28, 0
      %p395 = por %p393, %p394
      %s396 = ssub.s32 %s29, %s41
      %p397 = scmp.eq.s32.totalorder %s396, 0
      %s399 = sadd.s32 %s398, 1
      %s400 = scalar_select %p397, %s398, %s399
      %p403 = pneg %p397
      %p404 = scmp.eq.s32.totalorder %s22, 1
      %p405 = por %p403, %p404
      %p406 = scmp.ne.s32.totalorder %s398, %s401
      %p407 = scmp.eq.s32.totalorder %s22, 0
      %p408 = por %p406, %p407
      %p409 = scmp.ne.s32.totalorder %s398, %s401
      %p410 = scmp.eq.s32.totalorder %s27, 1
      %p411 = por %p409, %p410
      %p412 = scmp.ne.s32.totalorder %s401, %s402
      %p413 = scmp.eq.s32.totalorder %s27, 0
      %p414 = por %p412, %p413
      %p415 = scmp.ne.s32.totalorder %s401, %s402
      %p416 = scmp.eq.s32.totalorder %s28, 1
      %p417 = por %p415, %p416
      %p419 = scmp.ne.s32.totalorder %s402, %s418
      %p420 = scmp.eq.s32.totalorder %s28, 0
      %p421 = por %p419, %p420
      %p422 = scmp.le.s32.totalorder 1, %s22
      %p423 = scmp.lt.s32.totalorder %s22, 3
      %p424 = pnand %p422, %p423
      %p425 = pneg %p424
      // Predicated region
      $region9: #{tpu_custom_call.1} parent=5 // pred_check
        _
      $region10: #{tpu_custom_call.1} parent=5 // pred_check_branch
        %427 = sbr.rel (%p424) target = $region12
      $region11: #{tpu_custom_call.1} parent=5 // pred_region
        %s428 = ssub.s32 %s22, 1
        // Predicated region
        $region13: #{tpu_custom_call.1} parent=11 // pred_check
          %p429 = pneg %p60
        $region14: #{tpu_custom_call.1} parent=11 // pred_check_branch
          %431 = sbr.rel (%p429) target = $region16
        $region15: #{tpu_custom_call.1} parent=11 // pred_region
          %s432 = smul.u32 2, %s31
          %p433 = scmp.lt.s32.totalorder %s432, 1
          %s434 = scalar_select %p433, %s432, 1
          %s435 = smul.addr %s434, 8
          %s436 = scalar_lea.vmem %s0, %s435
          %s437 = smul.u32 2, %s31
        $region16: #{tpu_custom_call.1} parent=11 // pred_fallthru
          _
        // Predicated region
        $region17: #{tpu_custom_call.1} parent=11 // pred_check
          %p438 = pneg %p315
        $region18: #{tpu_custom_call.1} parent=11 // pred_check_branch
          %440 = sbr.rel (%p438) target = $region20
        $region19: #{tpu_custom_call.1} parent=11 // pred_region
          _
        $region20: #{tpu_custom_call.1} parent=11 // pred_fallthru
          _
        // Predicated region
        $region21: #{tpu_custom_call.1} parent=11 // pred_check
          %p441 = pneg %p336
        $region22: #{tpu_custom_call.1} parent=11 // pred_check_branch
          %443 = sbr.rel (%p441) target = $region24
        $region23: #{tpu_custom_call.1} parent=11 // pred_region
          _
        $region24: #{tpu_custom_call.1} parent=11 // pred_fallthru
          _
        // Predicated region
        $region25: #{tpu_custom_call.1} parent=11 // pred_check
          %p444 = pneg %p362
        $region26: #{tpu_custom_call.1} parent=11 // pred_check_branch
          %446 = sbr.rel (%p444) target = $region28
        $region27: #{tpu_custom_call.1} parent=11 // pred_region
          %p447 = scmp.lt.s32.totalorder %s31, 0
          %s448 = scalar_select %p447, %s31, 0
          %s449 = smul.addr %s448, 2
          %s450 = scalar_lea.vmem %s12, %s449
        $region28: #{tpu_custom_call.1} parent=11 // pred_fallthru
          _
      $region12: #{tpu_custom_call.1} parent=5 // pred_fallthru
        _
      %p451 = scmp.lt.s32.totalorder %s22, 2
      // Predicated region
      $region29: #{tpu_custom_call.1} parent=5 // pred_check
        %p452 = pneg %p451
      $region30: #{tpu_custom_call.1} parent=5 // pred_check_branch
        %454 = sbr.rel (%p452) target = $region32
      $region31: #{tpu_custom_call.1} parent=5 // pred_region
        // Predicated region
        $region33: #{tpu_custom_call.1} parent=31 // pred_check
          %p455 = pneg %p80
        $region34: #{tpu_custom_call.1} parent=31 // pred_check_branch
          %457 = sbr.rel (%p455) target = $region36
        $region35: #{tpu_custom_call.1} parent=31 // pred_region
          %p458 = scmp.lt.s32.totalorder %s30, 1
          %s459 = scalar_select %p458, %s30, 1
          %s460 = smul.addr %s459, 16
          %s461 = smul.addr %s460, 4
          %s462 = scalar_lea.vmem %s1, %s461
        $region36: #{tpu_custom_call.1} parent=31 // pred_fallthru
          _
        // Predicated region
        $region37: #{tpu_custom_call.1} parent=31 // pred_check
          %p463 = pneg %p106
        $region38: #{tpu_custom_call.1} parent=31 // pred_check_branch
          %465 = sbr.rel (%p463) target = $region40
        $region39: #{tpu_custom_call.1} parent=31 // pred_region
          %p466 = scmp.lt.s32.totalorder %s30, 1
          %s467 = scalar_select %p466, %s30, 1
          %s468 = smul.addr %s467, 16
          %s469 = smul.addr %s468, 4
          %s470 = scalar_lea.vmem %s2, %s469
        $region40: #{tpu_custom_call.1} parent=31 // pred_fallthru
          _
        // Predicated region
        $region41: #{tpu_custom_call.1} parent=31 // pred_check
          %p471 = pneg %p132
        $region42: #{tpu_custom_call.1} parent=31 // pred_check_branch
          %473 = sbr.rel (%p471) target = $region44
        $region43: #{tpu_custom_call.1} parent=31 // pred_region
          %p474 = scmp.lt.s32.totalorder %s30, 1
          %s475 = scalar_select %p474, %s30, 1
          %s476 = smul.addr %s475, 16
          %s477 = smul.addr %s476, 4
          %s478 = scalar_lea.vmem %s3, %s477
        $region44: #{tpu_custom_call.1} parent=31 // pred_fallthru
          _
        // Predicated region
        $region45: #{tpu_custom_call.1} parent=31 // pred_check
          %p479 = pneg %p158
        $region46: #{tpu_custom_call.1} parent=31 // pred_check_branch
          %481 = sbr.rel (%p479) target = $region48
        $region47: #{tpu_custom_call.1} parent=31 // pred_region
          %p482 = scmp.lt.s32.totalorder %s30, 1
          %s483 = scalar_select %p482, %s30, 1
          %s484 = smul.addr %s483, 4
          %s485 = smul.addr %s484, 4
          %s486 = scalar_lea.vmem %s4, %s485
        $region48: #{tpu_custom_call.1} parent=31 // pred_fallthru
          _
        // Predicated region
        $region49: #{tpu_custom_call.1} parent=31 // pred_check
          %p487 = pneg %p184
        $region50: #{tpu_custom_call.1} parent=31 // pred_check_branch
          %489 = sbr.rel (%p487) target = $region52
        $region51: #{tpu_custom_call.1} parent=31 // pred_region
          %p490 = scmp.lt.s32.totalorder %s30, 1
          %s491 = scalar_select %p490, %s30, 1
          %s492 = smul.addr %s491, 4
          %s493 = smul.addr %s492, 4
          %s494 = scalar_lea.vmem %s5, %s493
        $region52: #{tpu_custom_call.1} parent=31 // pred_fallthru
          _
        // Predicated region
        $region53: #{tpu_custom_call.1} parent=31 // pred_check
          %p495 = pneg %p210
        $region54: #{tpu_custom_call.1} parent=31 // pred_check_branch
          %497 = sbr.rel (%p495) target = $region56
        $region55: #{tpu_custom_call.1} parent=31 // pred_region
          %p498 = scmp.lt.s32.totalorder %s30, 1
          %s499 = scalar_select %p498, %s30, 1
          %s500 = smul.addr %s499, 8
          %s501 = smul.addr %s500, 4
          %s502 = scalar_lea.vmem %s6, %s501
        $region56: #{tpu_custom_call.1} parent=31 // pred_fallthru
          _
        // Predicated region
        $region57: #{tpu_custom_call.1} parent=31 // pred_check
          %p503 = pneg %p236
        $region58: #{tpu_custom_call.1} parent=31 // pred_check_branch
          %505 = sbr.rel (%p503) target = $region60
        $region59: #{tpu_custom_call.1} parent=31 // pred_region
          %p506 = scmp.lt.s32.totalorder %s30, 1
          %s507 = scalar_select %p506, %s30, 1
          %s508 = smul.addr %s507, 3
          %s509 = smul.addr %s508, 4
          %s510 = scalar_lea.vmem %s7, %s509
        $region60: #{tpu_custom_call.1} parent=31 // pred_fallthru
          _
        // Predicated region
        $region61: #{tpu_custom_call.1} parent=31 // pred_check
          %p511 = pneg %p262
        $region62: #{tpu_custom_call.1} parent=31 // pred_check_branch
          %513 = sbr.rel (%p511) target = $region64
        $region63: #{tpu_custom_call.1} parent=31 // pred_region
          %p514 = scmp.lt.s32.totalorder %s30, 1
          %s515 = scalar_select %p514, %s30, 1
          %s516 = smul.addr %s515, 8
          %s517 = scalar_lea.vmem %s8, %s516
        $region64: #{tpu_custom_call.1} parent=31 // pred_fallthru
          _
        // Predicated region
        $region65: #{tpu_custom_call.1} parent=31 // pred_check
          %p518 = pneg %p288
        $region66: #{tpu_custom_call.1} parent=31 // pred_check_branch
          %520 = sbr.rel (%p518) target = $region68
        $region67: #{tpu_custom_call.1} parent=31 // pred_region
          %p521 = scmp.lt.s32.totalorder %s30, 1
          %s522 = scalar_select %p521, %s30, 1
          %s523 = scalar_lea.vmem %s9, %s522
        $region68: #{tpu_custom_call.1} parent=31 // pred_fallthru
          _
      $region32: #{tpu_custom_call.1} parent=5 // pred_fallthru
        _
      %p524 = scmp.le.s32.totalorder 1, %s22
      %p525 = scmp.lt.s32.totalorder %s22, 3
      %p526 = pnand %p524, %p525
      %p527 = pneg %p526
      // Predicated region
      $region69: #{tpu_custom_call.1} parent=5 // pred_check
        _
      $region70: #{tpu_custom_call.1} parent=5 // pred_check_branch
        %529 = sbr.rel (%p526) target = $region72
      $region71: #{tpu_custom_call.1} parent=5 // pred_region
        %s530 = ssub.s32 %s22, 1
        %s531 = smul.u32 2, %s31
        %p532 = scmp.lt.s32.totalorder %s531, 1
        %s533 = scalar_select %p532, %s531, 1
        %s534 = smul.addr %s533, 8
        %s535 = scalar_lea.vmem %s0, %s534
        %p536 = pneg %p60
        %p537 = pneg %p57
        %p538 = scmp.lt.s32.totalorder %s32, 1
        %s539 = scalar_select %p538, %s32, 1
        %s540 = smul.addr %s539, 16
        %s541 = smul.addr %s540, 4
        %s542 = scalar_lea.vmem %s1, %s541
        %p543 = pneg %p86
        %p544 = pneg %p83
        %p545 = scmp.lt.s32.totalorder %s32, 1
        %s546 = scalar_select %p545, %s32, 1
        %s547 = smul.addr %s546, 16
        %s548 = smul.addr %s547, 4
        %s549 = scalar_lea.vmem %s2, %s548
        %p550 = pneg %p112
        %p551 = pneg %p109
        %p552 = scmp.lt.s32.totalorder %s32, 1
        %s553 = scalar_select %p552, %s32, 1
        %s554 = smul.addr %s553, 16
        %s555 = smul.addr %s554, 4
        %s556 = scalar_lea.vmem %s3, %s555
        %p557 = pneg %p138
        %p558 = pneg %p135
        %p559 = scmp.lt.s32.totalorder %s32, 1
        %s560 = scalar_select %p559, %s32, 1
        %s561 = smul.addr %s560, 4
        %s562 = smul.addr %s561, 4
        %s563 = scalar_lea.vmem %s4, %s562
        %p564 = pneg %p164
        %p565 = pneg %p161
        %p566 = scmp.lt.s32.totalorder %s32, 1
        %s567 = scalar_select %p566, %s32, 1
        %s568 = smul.addr %s567, 4
        %s569 = smul.addr %s568, 4
        %s570 = scalar_lea.vmem %s5, %s569
        %p571 = pneg %p190
        %p572 = pneg %p187
        %p573 = scmp.lt.s32.totalorder %s32, 1
        %s574 = scalar_select %p573, %s32, 1
        %s575 = smul.addr %s574, 8
        %s576 = smul.addr %s575, 4
        %s577 = scalar_lea.vmem %s6, %s576
        %p578 = pneg %p216
        %p579 = pneg %p213
        %p580 = scmp.lt.s32.totalorder %s32, 1
        %s581 = scalar_select %p580, %s32, 1
        %s582 = smul.addr %s581, 3
        %s583 = smul.addr %s582, 4
        %s584 = scalar_lea.vmem %s7, %s583
        %p585 = pneg %p242
        %p586 = pneg %p239
        %p587 = scmp.lt.s32.totalorder %s32, 1
        %s588 = scalar_select %p587, %s32, 1
        %s589 = smul.addr %s588, 8
        %s590 = scalar_lea.vmem %s8, %s589
        %p591 = pneg %p268
        %p592 = pneg %p265
        %p593 = scmp.lt.s32.totalorder %s32, 1
        %s594 = scalar_select %p593, %s32, 1
        %s595 = scalar_lea.vmem %s9, %s594
        %p596 = pneg %p294
        %p597 = pneg %p291
        %p598 = pneg %p315
        %p599 = pneg %p312
        %p600 = pneg %p336
        %p601 = pneg %p333
        %p602 = scmp.lt.s32.totalorder %s31, 0
        %s603 = scalar_select %p602, %s31, 0
        %s604 = smul.addr %s603, 2
        %s605 = scalar_lea.vmem %s12, %s604
        %p606 = pneg %p362
        %p607 = pneg %p359
        %p608 = pneg %p388
        %p609 = pneg %p385
        %p610 = pneg %p414
        %p611 = pneg %p411
        %p612 = scmp.lt.s32.totalorder %s31, 0
        %s613 = scalar_select %p612, %s31, 0
        %s614 = smul.addr %s613, 2
        %s615 = scalar_lea.vmem %s14, %s614
        %s616 = smul.u32 2, %s31
        %p617 = scmp.lt.s32.totalorder %s616, 1
        %s618 = scalar_select %p617, %s616, 1
        %s619 = smul.addr %s618, 8
        %s620 = scalar_lea.vmem %s0, %s619
        %s621 = smul.u32 2, %s31
        %p622 = scmp.lt.s32.totalorder %s32, 1
        %s623 = scalar_select %p622, %s32, 1
        %s624 = smul.addr %s623, 16
        %s625 = smul.addr %s624, 4
        %s626 = scalar_lea.vmem %s1, %s625
        %p627 = scmp.lt.s32.totalorder %s32, 1
        %s628 = scalar_select %p627, %s32, 1
        %s629 = smul.addr %s628, 16
        %s630 = smul.addr %s629, 4
        %s631 = scalar_lea.vmem %s2, %s630
        %p632 = scmp.lt.s32.totalorder %s32, 1
        %s633 = scalar_select %p632, %s32, 1
        %s634 = smul.addr %s633, 16
        %s635 = smul.addr %s634, 4
        %s636 = scalar_lea.vmem %s3, %s635
        %p637 = scmp.lt.s32.totalorder %s32, 1
        %s638 = scalar_select %p637, %s32, 1
        %s639 = smul.addr %s638, 4
        %s640 = smul.addr %s639, 4
        %s641 = scalar_lea.vmem %s4, %s640
        %p642 = scmp.lt.s32.totalorder %s32, 1
        %s643 = scalar_select %p642, %s32, 1
        %s644 = smul.addr %s643, 4
        %s645 = smul.addr %s644, 4
        %s646 = scalar_lea.vmem %s5, %s645
        %p647 = scmp.lt.s32.totalorder %s32, 1
        %s648 = scalar_select %p647, %s32, 1
        %s649 = smul.addr %s648, 8
        %s650 = smul.addr %s649, 4
        %s651 = scalar_lea.vmem %s6, %s650
        %p652 = scmp.lt.s32.totalorder %s32, 1
        %s653 = scalar_select %p652, %s32, 1
        %s654 = smul.addr %s653, 3
        %s655 = smul.addr %s654, 4
        %s656 = scalar_lea.vmem %s7, %s655
        %p657 = scmp.lt.s32.totalorder %s32, 1
        %s658 = scalar_select %p657, %s32, 1
        %s659 = smul.addr %s658, 8
        %s660 = scalar_lea.vmem %s8, %s659
        %p661 = scmp.lt.s32.totalorder %s32, 1
        %s662 = scalar_select %p661, %s32, 1
        %s663 = scalar_lea.vmem %s9, %s662
        %p664 = scmp.lt.s32.totalorder %s31, 0
        %s665 = scalar_select %p664, %s31, 0
        %s666 = smul.addr %s665, 2
        %s667 = scalar_lea.vmem %s12, %s666
        %p668 = scmp.lt.s32.totalorder %s31, 0
        %s669 = scalar_select %p668, %s31, 0
        %s670 = smul.addr %s669, 2
        %s671 = scalar_lea.vmem %s14, %s670
        %p673 = scmp.eq.s32.totalorder %s32, 0
        // Predicated region
        $region73: #{tpu_custom_call.1} parent=71 // pred_check
          %p674 = pneg %p673
        $region74: #{tpu_custom_call.1} parent=71 // pred_check_branch
          %676 = sbr.rel (%p674) target = $region76
        $region75: #{tpu_custom_call.1} parent=71 // pred_region
          %v677 = vld [vmem:[%s620] sm:$0xff]
          %v678 = vld [vmem:[%s620 + $0x8] sm:$0xff]
          %vm679 = vcmask 261120
          %680 = vst.msk [vmem:[#allocation2] sm:$0xff] %vm679, %v677
          %681 = vst.msk [vmem:[#allocation2 + $0x8] sm:$0xff] %vm679, %v678
        $region76: #{tpu_custom_call.1} parent=71 // pred_fallthru
          _
        %v682 = vld [vmem:[#allocation2] sm:$0xff]
        %v683 = vld [vmem:[#allocation2 + $0x8] sm:$0xff]
        %v684 = vpack.c.bf16 %v683, %v682
        %v685 = vld [vmem:[%s656] sm:$0xf]
        %v686 = vld [vmem:[%s656 + $0x4] sm:$0xf]
        %v687 = vld [vmem:[%s656 + $0x8] sm:$0xf]
        %v688 = vld [vmem:[%s660] sm:$0x3f]
        %v689 = vld [vmem:[%s626] sm:$0xf]
        %v690 = vld [vmem:[%s626 + $0x4] sm:$0xf]
        %v691 = vld [vmem:[%s626 + $0x8] sm:$0xf]
        %v692 = vld [vmem:[%s626 + $0xc] sm:$0xf]
        %v693 = vperm.slane %v685, 0
        %v698 = vunpack.c.l.b16 %v689
        %v699 = vunpack.c.l.b16 %v690
        %v700 = vunpack.c.l.b16 %v691
        %v701 = vunpack.c.l.b16 %v692
        %v702 = vpack.c.b16 %v699, %v698
        %v703 = vpack.c.b16 %v701, %v700
        %vm706 = vcmask 261120
        %v708 = vsel %vm706, %v684, 0
        %710 = vmatpush.bf16.msra.mxu0 0
        %711 = vmatpush.bf16.msra.mxu0 0
        %712 = vmatpush.bf16.msra.mxu0 0
        %713 = vmatpush.bf16.msra.mxu0 0
        %714 = vmatpush.bf16.msra.mxu0 0
        %715 = vmatpush.bf16.msra.mxu0 0
        %716 = vmatpush.bf16.msra.mxu0 %v703
        %717 = vmatpush.bf16.msra.mxu0 %v702
        %718 = vmatmul.bf16.gmra.mxu0 %v708
        %v719 = vpop.f32.mrf.mxu0
        %v720 = vadd.f32 %v693, %v719
        %v721 = vpop.f32.mrf.mxu0
        %v722 = vadd.f32 %v693, %v721
        %723 = vdwg.mxu0
        %v724 = vld [vmem:[%s631] sm:$0xf]
        %v725 = vld [vmem:[%s631 + $0x4] sm:$0xf]
        %v726 = vld [vmem:[%s631 + $0x8] sm:$0xf]
        %v727 = vld [vmem:[%s631 + $0xc] sm:$0xf]
        %v728 = vperm.slane %v686, 0
        %v733 = vunpack.c.l.b16 %v724
        %v734 = vunpack.c.l.b16 %v725
        %v735 = vunpack.c.l.b16 %v726
        %v736 = vunpack.c.l.b16 %v727
        %v737 = vpack.c.b16 %v734, %v733
        %v738 = vpack.c.b16 %v736, %v735
        %741 = vmatpush.bf16.msra.mxu0 0
        %742 = vmatpush.bf16.msra.mxu0 0
        %743 = vmatpush.bf16.msra.mxu0 0
        %744 = vmatpush.bf16.msra.mxu0 0
        %745 = vmatpush.bf16.msra.mxu0 0
        %746 = vmatpush.bf16.msra.mxu0 0
        %747 = vmatpush.bf16.msra.mxu0 %v738
        %748 = vmatpush.bf16.msra.mxu0 %v737
        %749 = vmatmul.bf16.gmra.mxu0 %v708
        %v750 = vpop.f32.mrf.mxu0
        %v751 = vadd.f32 %v728, %v750
        %v752 = vpop.f32.mrf.mxu0
        %v753 = vadd.f32 %v728, %v752
        %754 = vdwg.mxu0
        %v755 = vld [vmem:[%s636] sm:$0xf]
        %v756 = vld [vmem:[%s636 + $0x4] sm:$0xf]
        %v757 = vld [vmem:[%s636 + $0x8] sm:$0xf]
        %v758 = vld [vmem:[%s636 + $0xc] sm:$0xf]
        %v759 = vperm.slane %v687, 0
        %v764 = vunpack.c.l.b16 %v755
        %v765 = vunpack.c.l.b16 %v756
        %v766 = vunpack.c.l.b16 %v757
        %v767 = vunpack.c.l.b16 %v758
        %v768 = vpack.c.b16 %v765, %v764
        %v769 = vpack.c.b16 %v767, %v766
        %772 = vmatpush.bf16.msra.mxu0 0
        %773 = vmatpush.bf16.msra.mxu0 0
        %774 = vmatpush.bf16.msra.mxu0 0
        %775 = vmatpush.bf16.msra.mxu0 0
        %776 = vmatpush.bf16.msra.mxu0 0
        %777 = vmatpush.bf16.msra.mxu0 0
        %778 = vmatpush.bf16.msra.mxu0 %v769
        %779 = vmatpush.bf16.msra.mxu0 %v768
        %780 = vmatmul.bf16.gmra.mxu0 %v708
        %v781 = vpop.f32.mrf.mxu0
        %v782 = vadd.f32 %v759, %v781
        %v783 = vpop.f32.mrf.mxu0
        %v784 = vadd.f32 %v759, %v783
        %785 = vdwg.mxu0
        %v786 = vpack.c.bf16 %v720, %v720
        %v787 = vpack.c.bf16 %v722, %v722
        %v788 = vpack.c.bf16 %v751, %v751
        %v789 = vpack.c.bf16 %v753, %v753
        %v790 = vpack.c.bf16 %v782, %v782
        %v791 = vpack.c.bf16 %v784, %v784
        %vm792 = vcmask 64512
        %v794 = vsel %vm792, %v786, 0
        %v797 = vsel %vm792, %v788, 0
        %799 = vmatpush.bf16.xpose.msra.mxu0 0
        %800 = vmatpush.bf16.xpose.msra.mxu0 0
        %801 = vmatpush.bf16.xpose.msra.mxu0 0
        %802 = vmatpush.bf16.xpose.msra.mxu0 0
        %803 = vmatpush.bf16.xpose.msra.mxu0 0
        %804 = vmatpush.bf16.xpose.msra.mxu0 0
        %805 = vmatpush.bf16.xpose.msra.mxu0 0
        %806 = vmatpush.bf16.xpose.msra.mxu0 %v797
        %807 = vmatmul.bf16.gmra.mxu0 %v794
        %v808 = vpop.f32.mrf.mxu0
        %v809 = vadd.f32 0.0, %v808
        %v810 = vpop.f32.mrf.mxu0
        %811 = vdwg.mxu0
        %v813 = vsel %vm792, %v787, 0
        %v816 = vsel %vm792, %v789, 0
        %818 = vmatpush.bf16.xpose.msra.mxu0 0
        %819 = vmatpush.bf16.xpose.msra.mxu0 0
        %820 = vmatpush.bf16.xpose.msra.mxu0 0
        %821 = vmatpush.bf16.xpose.msra.mxu0 0
        %822 = vmatpush.bf16.xpose.msra.mxu0 0
        %823 = vmatpush.bf16.xpose.msra.mxu0 0
        %824 = vmatpush.bf16.xpose.msra.mxu0 0
        %825 = vmatpush.bf16.xpose.msra.mxu0 %v816
        %826 = vmatmul.bf16.gmra.mxu0 %v813
        %v827 = vpop.f32.mrf.mxu0
        %v828 = vadd.f32 0.0, %v827
        %v829 = vpop.f32.mrf.mxu0
        %830 = vdwg.mxu0
        %v831 = vmul.f32 %v809, 0.35355338
        %v832 = vmul.f32 %v828, 0.35355338
        %v833 = vsel %vm792, %v831, -inf
        %834 = vmax.xlane.f32.xlu0 %v833
        %v835 = vpop.xlane.xlu0 %834
        %v836 = vsel %vm792, %v832, -inf
        %837 = vmax.xlane.f32.xlu0 %v836
        %v838 = vpop.xlane.xlu0 %837
        %v839 = vsub.f32 %v831, %v835
        %v840 = vsub.f32 %v832, %v838
        %v841 = vmul.f32 %v839, 1.442695
        %v842 = vpow.pop %v841
        %v843 = vmul.f32 %v840, 1.442695
        %v844 = vpow.pop %v843
        %v845 = vsel %vm792, %v842, 0.0
        %846 = vadd.xlane.f32.xlu0 %v845
        %v847 = vpop.xlane.xlu0 %846
        %v848 = vsel %vm792, %v844, 0.0
        %849 = vadd.xlane.f32.xlu0 %v848
        %v850 = vpop.xlane.xlu0 %849
        %v851 = vrcp.pop %v847
        %v852 = vrcp.pop %v850
        %v853 = vmul.f32 %v842, %v851
        %v854 = vmul.f32 %v844, %v852
        %v855 = vpack.c.bf16 %v853, %v853
        %v856 = vpack.c.bf16 %v854, %v854
        %v858 = vsel %vm792, %v855, 0
        %vm860 = vcmask 1043456
        %v862 = vsel %vm860, %v790, 0
        %864 = vmatpush.bf16.msra.mxu0 0
        %865 = vmatpush.bf16.msra.mxu0 0
        %866 = vmatpush.bf16.msra.mxu0 0
        %867 = vmatpush.bf16.msra.mxu0 0
        %868 = vmatpush.bf16.msra.mxu0 0
        %869 = vmatpush.bf16.msra.mxu0 0
        %870 = vmatpush.bf16.msra.mxu0 0
        %871 = vmatpush.bf16.msra.mxu0 %v862
        %872 = vmatmul.bf16.gmra.mxu0 %v858
        %v873 = vpop.f32.mrf.mxu0
        %v874 = vadd.f32 0.0, %v873
        %v875 = vpop.f32.mrf.mxu0
        %876 = vdwg.mxu0
        %v878 = vsel %vm792, %v856, 0
        %v881 = vsel %vm860, %v791, 0
        %883 = vmatpush.bf16.msra.mxu0 0
        %884 = vmatpush.bf16.msra.mxu0 0
        %885 = vmatpush.bf16.msra.mxu0 0
        %886 = vmatpush.bf16.msra.mxu0 0
        %887 = vmatpush.bf16.msra.mxu0 0
        %888 = vmatpush.bf16.msra.mxu0 0
        %889 = vmatpush.bf16.msra.mxu0 0
        %890 = vmatpush.bf16.msra.mxu0 %v881
        %891 = vmatmul.bf16.gmra.mxu0 %v878
        %v892 = vpop.f32.mrf.mxu0
        %v893 = vadd.f32 0.0, %v892
        %v894 = vpop.f32.mrf.mxu0
        %895 = vdwg.mxu0
        %v896 = vpack.c.bf16 %v893, %v874
        %v897 = vld [vmem:[%s641] sm:$0xf]
        %s898 = scalar_lea.vmem %s626, 16
        %v899 = vld [vmem:[%s898] sm:$0xf]
        %v900 = vld [vmem:[%s898 + $0x4] sm:$0xf]
        %v901 = vld [vmem:[%s898 + $0x8] sm:$0xf]
        %v902 = vld [vmem:[%s898 + $0xc] sm:$0xf]
        %v903 = vperm.slane %v685, 1
        %v908 = vunpack.c.l.b16 %v899
        %v909 = vunpack.c.l.b16 %v900
        %v910 = vunpack.c.l.b16 %v901
        %v911 = vunpack.c.l.b16 %v902
        %v912 = vpack.c.b16 %v909, %v908
        %v913 = vpack.c.b16 %v911, %v910
        %916 = vmatpush.bf16.msra.mxu0 0
        %917 = vmatpush.bf16.msra.mxu0 0
        %918 = vmatpush.bf16.msra.mxu0 0
        %919 = vmatpush.bf16.msra.mxu0 0
        %920 = vmatpush.bf16.msra.mxu0 0
        %921 = vmatpush.bf16.msra.mxu0 0
        %922 = vmatpush.bf16.msra.mxu0 %v913
        %923 = vmatpush.bf16.msra.mxu0 %v912
        %924 = vmatmul.bf16.gmra.mxu0 %v708
        %v925 = vpop.f32.mrf.mxu0
        %v926 = vadd.f32 %v903, %v925
        %v927 = vpop.f32.mrf.mxu0
        %v928 = vadd.f32 %v903, %v927
        %929 = vdwg.mxu0
        %s930 = scalar_lea.vmem %s631, 16
        %v931 = vld [vmem:[%s930] sm:$0xf]
        %v932 = vld [vmem:[%s930 + $0x4] sm:$0xf]
        %v933 = vld [vmem:[%s930 + $0x8] sm:$0xf]
        %v934 = vld [vmem:[%s930 + $0xc] sm:$0xf]
        %v935 = vperm.slane %v686, 1
        %v940 = vunpack.c.l.b16 %v931
        %v941 = vunpack.c.l.b16 %v932
        %v942 = vunpack.c.l.b16 %v933
        %v943 = vunpack.c.l.b16 %v934
        %v944 = vpack.c.b16 %v941, %v940
        %v945 = vpack.c.b16 %v943, %v942
        %948 = vmatpush.bf16.msra.mxu0 0
        %949 = vmatpush.bf16.msra.mxu0 0
        %950 = vmatpush.bf16.msra.mxu0 0
        %951 = vmatpush.bf16.msra.mxu0 0
        %952 = vmatpush.bf16.msra.mxu0 0
        %953 = vmatpush.bf16.msra.mxu0 0
        %954 = vmatpush.bf16.msra.mxu0 %v945
        %955 = vmatpush.bf16.msra.mxu0 %v944
        %956 = vmatmul.bf16.gmra.mxu0 %v708
        %v957 = vpop.f32.mrf.mxu0
        %v958 = vadd.f32 %v935, %v957
        %v959 = vpop.f32.mrf.mxu0
        %v960 = vadd.f32 %v935, %v959
        %961 = vdwg.mxu0
        %s962 = scalar_lea.vmem %s636, 16
        %v963 = vld [vmem:[%s962] sm:$0xf]
        %v964 = vld [vmem:[%s962 + $0x4] sm:$0xf]
        %v965 = vld [vmem:[%s962 + $0x8] sm:$0xf]
        %v966 = vld [vmem:[%s962 + $0xc] sm:$0xf]
        %v967 = vperm.slane %v687, 1
        %v972 = vunpack.c.l.b16 %v963
        %v973 = vunpack.c.l.b16 %v964
        %v974 = vunpack.c.l.b16 %v965
        %v975 = vunpack.c.l.b16 %v966
        %v976 = vpack.c.b16 %v973, %v972
        %v977 = vpack.c.b16 %v975, %v974
        %980 = vmatpush.bf16.msra.mxu0 0
        %981 = vmatpush.bf16.msra.mxu0 0
        %982 = vmatpush.bf16.msra.mxu0 0
        %983 = vmatpush.bf16.msra.mxu0 0
        %984 = vmatpush.bf16.msra.mxu0 0
        %985 = vmatpush.bf16.msra.mxu0 0
        %986 = vmatpush.bf16.msra.mxu0 %v977
        %987 = vmatpush.bf16.msra.mxu0 %v976
        %988 = vmatmul.bf16.gmra.mxu0 %v708
        %v989 = vpop.f32.mrf.mxu0
        %v990 = vadd.f32 %v967, %v989
        %v991 = vpop.f32.mrf.mxu0
        %v992 = vadd.f32 %v967, %v991
        %993 = vdwg.mxu0
        %v994 = vpack.c.bf16 %v926, %v926
        %v995 = vpack.c.bf16 %v928, %v928
        %v996 = vpack.c.bf16 %v958, %v958
        %v997 = vpack.c.bf16 %v960, %v960
        %v998 = vpack.c.bf16 %v990, %v990
        %v999 = vpack.c.bf16 %v992, %v992
        %v1001 = vsel %vm792, %v994, 0
        %v1004 = vsel %vm792, %v996, 0
        %1006 = vmatpush.bf16.xpose.msra.mxu0 0
        %1007 = vmatpush.bf16.xpose.msra.mxu0 0
        %1008 = vmatpush.bf16.xpose.msra.mxu0 0
        %1009 = vmatpush.bf16.xpose.msra.mxu0 0
        %1010 = vmatpush.bf16.xpose.msra.mxu0 0
        %1011 = vmatpush.bf16.xpose.msra.mxu0 0
        %1012 = vmatpush.bf16.xpose.msra.mxu0 0
        %1013 = vmatpush.bf16.xpose.msra.mxu0 %v1004
        %1014 = vmatmul.bf16.gmra.mxu0 %v1001
        %v1015 = vpop.f32.mrf.mxu0
        %v1016 = vadd.f32 0.0, %v1015
        %v1017 = vpop.f32.mrf.mxu0
        %1018 = vdwg.mxu0
        %v1020 = vsel %vm792, %v995, 0
        %v1023 = vsel %vm792, %v997, 0
        %1025 = vmatpush.bf16.xpose.msra.mxu0 0
        %1026 = vmatpush.bf16.xpose.msra.mxu0 0
        %1027 = vmatpush.bf16.xpose.msra.mxu0 0
        %1028 = vmatpush.bf16.xpose.msra.mxu0 0
        %1029 = vmatpush.bf16.xpose.msra.mxu0 0
        %1030 = vmatpush.bf16.xpose.msra.mxu0 0
        %1031 = vmatpush.bf16.xpose.msra.mxu0 0
        %1032 = vmatpush.bf16.xpose.msra.mxu0 %v1023
        %1033 = vmatmul.bf16.gmra.mxu0 %v1020
        %v1034 = vpop.f32.mrf.mxu0
        %v1035 = vadd.f32 0.0, %v1034
        %v1036 = vpop.f32.mrf.mxu0
        %1037 = vdwg.mxu0
        %v1038 = vmul.f32 %v1016, 0.35355338
        %v1039 = vmul.f32 %v1035, 0.35355338
        %v1040 = vsel %vm792, %v1038, -inf
        %1041 = vmax.xlane.f32.xlu0 %v1040
        %v1042 = vpop.xlane.xlu0 %1041
        %v1043 = vsel %vm792, %v1039, -inf
        %1044 = vmax.xlane.f32.xlu0 %v1043
        %v1045 = vpop.xlane.xlu0 %1044
        %v1046 = vsub.f32 %v1038, %v1042
        %v1047 = vsub.f32 %v1039, %v1045
        %v1048 = vmul.f32 %v1046, 1.442695
        %v1049 = vpow.pop %v1048
        %v1050 = vmul.f32 %v1047, 1.442695
        %v1051 = vpow.pop %v1050
        %v1052 = vsel %vm792, %v1049, 0.0
        %1053 = vadd.xlane.f32.xlu0 %v1052
        %v1054 = vpop.xlane.xlu0 %1053
        %v1055 = vsel %vm792, %v1051, 0.0
        %1056 = vadd.xlane.f32.xlu0 %v1055
        %v1057 = vpop.xlane.xlu0 %1056
        %v1058 = vrcp.pop %v1054
        %v1059 = vrcp.pop %v1057
        %v1060 = vmul.f32 %v1049, %v1058
        %v1061 = vmul.f32 %v1051, %v1059
        %v1062 = vpack.c.bf16 %v1060, %v1060
        %v1063 = vpack.c.bf16 %v1061, %v1061
        %v1065 = vsel %vm792, %v1062, 0
        %v1068 = vsel %vm860, %v998, 0
        %1070 = vmatpush.bf16.msra.mxu0 0
        %1071 = vmatpush.bf16.msra.mxu0 0
        %1072 = vmatpush.bf16.msra.mxu0 0
        %1073 = vmatpush.bf16.msra.mxu0 0
        %1074 = vmatpush.bf16.msra.mxu0 0
        %1075 = vmatpush.bf16.msra.mxu0 0
        %1076 = vmatpush.bf16.msra.mxu0 0
        %1077 = vmatpush.bf16.msra.mxu0 %v1068
        %1078 = vmatmul.bf16.gmra.mxu0 %v1065
        %v1079 = vpop.f32.mrf.mxu0
        %v1080 = vadd.f32 0.0, %v1079
        %v1081 = vpop.f32.mrf.mxu0
        %1082 = vdwg.mxu0
        %v1084 = vsel %vm792, %v1063, 0
        %v1087 = vsel %vm860, %v999, 0
        %1089 = vmatpush.bf16.msra.mxu0 0
        %1090 = vmatpush.bf16.msra.mxu0 0
        %1091 = vmatpush.bf16.msra.mxu0 0
        %1092 = vmatpush.bf16.msra.mxu0 0
        %1093 = vmatpush.bf16.msra.mxu0 0
        %1094 = vmatpush.bf16.msra.mxu0 0
        %1095 = vmatpush.bf16.msra.mxu0 0
        %1096 = vmatpush.bf16.msra.mxu0 %v1087
        %1097 = vmatmul.bf16.gmra.mxu0 %v1084
        %v1098 = vpop.f32.mrf.mxu0
        %v1099 = vadd.f32 0.0, %v1098
        %v1100 = vpop.f32.mrf.mxu0
        %1101 = vdwg.mxu0
        %v1102 = vpack.c.bf16 %v1099, %v1080
        %s1103 = scalar_lea.vmem %s641, 4
        %v1104 = vld [vmem:[%s1103] sm:$0xf]
        %v1106 = vsel %vm792, %v1102, 0
        %v1109 = vsel %vm860, %v1104, 0
        %1111 = vmatpush.bf16.msra.mxu0 0
        %1112 = vmatpush.bf16.msra.mxu0 0
        %1113 = vmatpush.bf16.msra.mxu0 0
        %1114 = vmatpush.bf16.msra.mxu0 0
        %1115 = vmatpush.bf16.msra.mxu0 0
        %1116 = vmatpush.bf16.msra.mxu0 0
        %1117 = vmatpush.bf16.msra.mxu0 0
        %1118 = vmatpush.bf16.msra.mxu0 %v1109
        %1119 = vmatmul.bf16.gmra.mxu0 %v1106
        %v1120 = vpop.f32.mrf.mxu0
        %v1121 = vadd.f32 0.0, %v1120
        %v1122 = vpop.f32.mrf.mxu0
        %v1123 = vadd.f32 0.0, %v1122
        %1124 = vdwg.mxu0
        %v1126 = vsel %vm792, %v896, 0
        %v1129 = vsel %vm860, %v897, 0
        %1131 = vmatpush.bf16.msra.mxu0 0
        %1132 = vmatpush.bf16.msra.mxu0 0
        %1133 = vmatpush.bf16.msra.mxu0 0
        %1134 = vmatpush.bf16.msra.mxu0 0
        %1135 = vmatpush.bf16.msra.mxu0 0
        %1136 = vmatpush.bf16.msra.mxu0 0
        %1137 = vmatpush.bf16.msra.mxu0 0
        %1138 = vmatpush.bf16.msra.mxu0 %v1129
        %1139 = vmatmul.bf16.gmra.mxu0 %v1126
        %v1140 = vpop.f32.mrf.mxu0
        %v1141 = vadd.f32 %v1121, %v1140
        %v1142 = vpop.f32.mrf.mxu0
        %v1143 = vadd.f32 %v1123, %v1142
        %1144 = vdwg.mxu0
        %s1145 = scalar_lea.vmem %s626, 32
        %v1146 = vld [vmem:[%s1145] sm:$0xf]
        %v1147 = vld [vmem:[%s1145 + $0x4] sm:$0xf]
        %v1148 = vld [vmem:[%s1145 + $0x8] sm:$0xf]
        %v1149 = vld [vmem:[%s1145 + $0xc] sm:$0xf]
        %v1150 = vperm.slane %v685, 2
        %v1155 = vunpack.c.l.b16 %v1146
        %v1156 = vunpack.c.l.b16 %v1147
        %v1157 = vunpack.c.l.b16 %v1148
        %v1158 = vunpack.c.l.b16 %v1149
        %v1159 = vpack.c.b16 %v1156, %v1155
        %v1160 = vpack.c.b16 %v1158, %v1157
        %1163 = vmatpush.bf16.msra.mxu0 0
        %1164 = vmatpush.bf16.msra.mxu0 0
        %1165 = vmatpush.bf16.msra.mxu0 0
        %1166 = vmatpush.bf16.msra.mxu0 0
        %1167 = vmatpush.bf16.msra.mxu0 0
        %1168 = vmatpush.bf16.msra.mxu0 0
        %1169 = vmatpush.bf16.msra.mxu0 %v1160
        %1170 = vmatpush.bf16.msra.mxu0 %v1159
        %1171 = vmatmul.bf16.gmra.mxu0 %v708
        %v1172 = vpop.f32.mrf.mxu0
        %v1173 = vadd.f32 %v1150, %v1172
        %v1174 = vpop.f32.mrf.mxu0
        %v1175 = vadd.f32 %v1150, %v1174
        %1176 = vdwg.mxu0
        %s1177 = scalar_lea.vmem %s631, 32
        %v1178 = vld [vmem:[%s1177] sm:$0xf]
        %v1179 = vld [vmem:[%s1177 + $0x4] sm:$0xf]
        %v1180 = vld [vmem:[%s1177 + $0x8] sm:$0xf]
        %v1181 = vld [vmem:[%s1177 + $0xc] sm:$0xf]
        %v1182 = vperm.slane %v686, 2
        %v1187 = vunpack.c.l.b16 %v1178
        %v1188 = vunpack.c.l.b16 %v1179
        %v1189 = vunpack.c.l.b16 %v1180
        %v1190 = vunpack.c.l.b16 %v1181
        %v1191 = vpack.c.b16 %v1188, %v1187
        %v1192 = vpack.c.b16 %v1190, %v1189
        %1195 = vmatpush.bf16.msra.mxu0 0
        %1196 = vmatpush.bf16.msra.mxu0 0
        %1197 = vmatpush.bf16.msra.mxu0 0
        %1198 = vmatpush.bf16.msra.mxu0 0
        %1199 = vmatpush.bf16.msra.mxu0 0
        %1200 = vmatpush.bf16.msra.mxu0 0
        %1201 = vmatpush.bf16.msra.mxu0 %v1192
        %1202 = vmatpush.bf16.msra.mxu0 %v1191
        %1203 = vmatmul.bf16.gmra.mxu0 %v708
        %v1204 = vpop.f32.mrf.mxu0
        %v1205 = vadd.f32 %v1182, %v1204
        %v1206 = vpop.f32.mrf.mxu0
        %v1207 = vadd.f32 %v1182, %v1206
        %1208 = vdwg.mxu0
        %s1209 = scalar_lea.vmem %s636, 32
        %v1210 = vld [vmem:[%s1209] sm:$0xf]
        %v1211 = vld [vmem:[%s1209 + $0x4] sm:$0xf]
        %v1212 = vld [vmem:[%s1209 + $0x8] sm:$0xf]
        %v1213 = vld [vmem:[%s1209 + $0xc] sm:$0xf]
        %v1214 = vperm.slane %v687, 2
        %v1219 = vunpack.c.l.b16 %v1210
        %v1220 = vunpack.c.l.b16 %v1211
        %v1221 = vunpack.c.l.b16 %v1212
        %v1222 = vunpack.c.l.b16 %v1213
        %v1223 = vpack.c.b16 %v1220, %v1219
        %v1224 = vpack.c.b16 %v1222, %v1221
        %1227 = vmatpush.bf16.msra.mxu0 0
        %1228 = vmatpush.bf16.msra.mxu0 0
        %1229 = vmatpush.bf16.msra.mxu0 0
        %1230 = vmatpush.bf16.msra.mxu0 0
        %1231 = vmatpush.bf16.msra.mxu0 0
        %1232 = vmatpush.bf16.msra.mxu0 0
        %1233 = vmatpush.bf16.msra.mxu0 %v1224
        %1234 = vmatpush.bf16.msra.mxu0 %v1223
        %1235 = vmatmul.bf16.gmra.mxu0 %v708
        %v1236 = vpop.f32.mrf.mxu0
        %v1237 = vadd.f32 %v1214, %v1236
        %v1238 = vpop.f32.mrf.mxu0
        %v1239 = vadd.f32 %v1214, %v1238
        %1240 = vdwg.mxu0
        %v1241 = vpack.c.bf16 %v1173, %v1173
        %v1242 = vpack.c.bf16 %v1175, %v1175
        %v1243 = vpack.c.bf16 %v1205, %v1205
        %v1244 = vpack.c.bf16 %v1207, %v1207
        %v1245 = vpack.c.bf16 %v1237, %v1237
        %v1246 = vpack.c.bf16 %v1239, %v1239
        %v1248 = vsel %vm792, %v1241, 0
        %v1251 = vsel %vm792, %v1243, 0
        %1253 = vmatpush.bf16.xpose.msra.mxu0 0
        %1254 = vmatpush.bf16.xpose.msra.mxu0 0
        %1255 = vmatpush.bf16.xpose.msra.mxu0 0
        %1256 = vmatpush.bf16.xpose.msra.mxu0 0
        %1257 = vmatpush.bf16.xpose.msra.mxu0 0
        %1258 = vmatpush.bf16.xpose.msra.mxu0 0
        %1259 = vmatpush.bf16.xpose.msra.mxu0 0
        %1260 = vmatpush.bf16.xpose.msra.mxu0 %v1251
        %1261 = vmatmul.bf16.gmra.mxu0 %v1248
        %v1262 = vpop.f32.mrf.mxu0
        %v1263 = vadd.f32 0.0, %v1262
        %v1264 = vpop.f32.mrf.mxu0
        %1265 = vdwg.mxu0
        %v1267 = vsel %vm792, %v1242, 0
        %v1270 = vsel %vm792, %v1244, 0
        %1272 = vmatpush.bf16.xpose.msra.mxu0 0
        %1273 = vmatpush.bf16.xpose.msra.mxu0 0
        %1274 = vmatpush.bf16.xpose.msra.mxu0 0
        %1275 = vmatpush.bf16.xpose.msra.mxu0 0
        %1276 = vmatpush.bf16.xpose.msra.mxu0 0
        %1277 = vmatpush.bf16.xpose.msra.mxu0 0
        %1278 = vmatpush.bf16.xpose.msra.mxu0 0
        %1279 = vmatpush.bf16.xpose.msra.mxu0 %v1270
        %1280 = vmatmul.bf16.gmra.mxu0 %v1267
        %v1281 = vpop.f32.mrf.mxu0
        %v1282 = vadd.f32 0.0, %v1281
        %v1283 = vpop.f32.mrf.mxu0
        %1284 = vdwg.mxu0
        %v1285 = vmul.f32 %v1263, 0.35355338
        %v1286 = vmul.f32 %v1282, 0.35355338
        %v1287 = vsel %vm792, %v1285, -inf
        %1288 = vmax.xlane.f32.xlu0 %v1287
        %v1289 = vpop.xlane.xlu0 %1288
        %v1290 = vsel %vm792, %v1286, -inf
        %1291 = vmax.xlane.f32.xlu0 %v1290
        %v1292 = vpop.xlane.xlu0 %1291
        %v1293 = vsub.f32 %v1285, %v1289
        %v1294 = vsub.f32 %v1286, %v1292
        %v1295 = vmul.f32 %v1293, 1.442695
        %v1296 = vpow.pop %v1295
        %v1297 = vmul.f32 %v1294, 1.442695
        %v1298 = vpow.pop %v1297
        %v1299 = vsel %vm792, %v1296, 0.0
        %1300 = vadd.xlane.f32.xlu0 %v1299
        %v1301 = vpop.xlane.xlu0 %1300
        %v1302 = vsel %vm792, %v1298, 0.0
        %1303 = vadd.xlane.f32.xlu0 %v1302
        %v1304 = vpop.xlane.xlu0 %1303
        %v1305 = vrcp.pop %v1301
        %v1306 = vrcp.pop %v1304
        %v1307 = vmul.f32 %v1296, %v1305
        %v1308 = vmul.f32 %v1298, %v1306
        %v1309 = vpack.c.bf16 %v1307, %v1307
        %v1310 = vpack.c.bf16 %v1308, %v1308
        %v1312 = vsel %vm792, %v1309, 0
        %v1315 = vsel %vm860, %v1245, 0
        %1317 = vmatpush.bf16.msra.mxu0 0
        %1318 = vmatpush.bf16.msra.mxu0 0
        %1319 = vmatpush.bf16.msra.mxu0 0
        %1320 = vmatpush.bf16.msra.mxu0 0
        %1321 = vmatpush.bf16.msra.mxu0 0
        %1322 = vmatpush.bf16.msra.mxu0 0
        %1323 = vmatpush.bf16.msra.mxu0 0
        %1324 = vmatpush.bf16.msra.mxu0 %v1315
        %1325 = vmatmul.bf16.gmra.mxu0 %v1312
        %v1326 = vpop.f32.mrf.mxu0
        %v1327 = vadd.f32 0.0, %v1326
        %v1328 = vpop.f32.mrf.mxu0
        %1329 = vdwg.mxu0
        %v1331 = vsel %vm792, %v1310, 0
        %v1334 = vsel %vm860, %v1246, 0
        %1336 = vmatpush.bf16.msra.mxu0 0
        %1337 = vmatpush.bf16.msra.mxu0 0
        %1338 = vmatpush.bf16.msra.mxu0 0
        %1339 = vmatpush.bf16.msra.mxu0 0
        %1340 = vmatpush.bf16.msra.mxu0 0
        %1341 = vmatpush.bf16.msra.mxu0 0
        %1342 = vmatpush.bf16.msra.mxu0 0
        %1343 = vmatpush.bf16.msra.mxu0 %v1334
        %1344 = vmatmul.bf16.gmra.mxu0 %v1331
        %v1345 = vpop.f32.mrf.mxu0
        %v1346 = vadd.f32 0.0, %v1345
        %v1347 = vpop.f32.mrf.mxu0
        %1348 = vdwg.mxu0
        %v1349 = vpack.c.bf16 %v1346, %v1327
        %s1350 = scalar_lea.vmem %s641, 8
        %v1351 = vld [vmem:[%s1350] sm:$0xf]
        %v1353 = vsel %vm792, %v1349, 0
        %v1356 = vsel %vm860, %v1351, 0
        %1358 = vmatpush.bf16.msra.mxu0 0
        %1359 = vmatpush.bf16.msra.mxu0 0
        %1360 = vmatpush.bf16.msra.mxu0 0
        %1361 = vmatpush.bf16.msra.mxu0 0
        %1362 = vmatpush.bf16.msra.mxu0 0
        %1363 = vmatpush.bf16.msra.mxu0 0
        %1364 = vmatpush.bf16.msra.mxu0 0
        %1365 = vmatpush.bf16.msra.mxu0 %v1356
        %1366 = vmatmul.bf16.gmra.mxu0 %v1353
        %v1367 = vpop.f32.mrf.mxu0
        %v1368 = vadd.f32 0.0, %v1367
        %v1369 = vpop.f32.mrf.mxu0
        %v1370 = vadd.f32 0.0, %v1369
        %1371 = vdwg.mxu0
        %v1372 = vadd.f32 %v1141, %v1368
        %v1373 = vadd.f32 %v1143, %v1370
        %s1374 = scalar_lea.vmem %s626, 48
        %v1375 = vld [vmem:[%s1374] sm:$0xf]
        %v1376 = vld [vmem:[%s1374 + $0x4] sm:$0xf]
        %v1377 = vld [vmem:[%s1374 + $0x8] sm:$0xf]
        %v1378 = vld [vmem:[%s1374 + $0xc] sm:$0xf]
        %v1379 = vperm.slane %v685, 3
        %v1384 = vunpack.c.l.b16 %v1375
        %v1385 = vunpack.c.l.b16 %v1376
        %v1386 = vunpack.c.l.b16 %v1377
        %v1387 = vunpack.c.l.b16 %v1378
        %v1388 = vpack.c.b16 %v1385, %v1384
        %v1389 = vpack.c.b16 %v1387, %v1386
        %1392 = vmatpush.bf16.msra.mxu0 0
        %1393 = vmatpush.bf16.msra.mxu0 0
        %1394 = vmatpush.bf16.msra.mxu0 0
        %1395 = vmatpush.bf16.msra.mxu0 0
        %1396 = vmatpush.bf16.msra.mxu0 0
        %1397 = vmatpush.bf16.msra.mxu0 0
        %1398 = vmatpush.bf16.msra.mxu0 %v1389
        %1399 = vmatpush.bf16.msra.mxu0 %v1388
        %1400 = vmatmul.bf16.gmra.mxu0 %v708
        %v1401 = vpop.f32.mrf.mxu0
        %v1402 = vadd.f32 %v1379, %v1401
        %v1403 = vpop.f32.mrf.mxu0
        %v1404 = vadd.f32 %v1379, %v1403
        %1405 = vdwg.mxu0
        %s1406 = scalar_lea.vmem %s631, 48
        %v1407 = vld [vmem:[%s1406] sm:$0xf]
        %v1408 = vld [vmem:[%s1406 + $0x4] sm:$0xf]
        %v1409 = vld [vmem:[%s1406 + $0x8] sm:$0xf]
        %v1410 = vld [vmem:[%s1406 + $0xc] sm:$0xf]
        %v1411 = vperm.slane %v686, 3
        %v1416 = vunpack.c.l.b16 %v1407
        %v1417 = vunpack.c.l.b16 %v1408
        %v1418 = vunpack.c.l.b16 %v1409
        %v1419 = vunpack.c.l.b16 %v1410
        %v1420 = vpack.c.b16 %v1417, %v1416
        %v1421 = vpack.c.b16 %v1419, %v1418
        %1424 = vmatpush.bf16.msra.mxu0 0
        %1425 = vmatpush.bf16.msra.mxu0 0
        %1426 = vmatpush.bf16.msra.mxu0 0
        %1427 = vmatpush.bf16.msra.mxu0 0
        %1428 = vmatpush.bf16.msra.mxu0 0
        %1429 = vmatpush.bf16.msra.mxu0 0
        %1430 = vmatpush.bf16.msra.mxu0 %v1421
        %1431 = vmatpush.bf16.msra.mxu0 %v1420
        %1432 = vmatmul.bf16.gmra.mxu0 %v708
        %v1433 = vpop.f32.mrf.mxu0
        %v1434 = vadd.f32 %v1411, %v1433
        %v1435 = vpop.f32.mrf.mxu0
        %v1436 = vadd.f32 %v1411, %v1435
        %1437 = vdwg.mxu0
        %s1438 = scalar_lea.vmem %s636, 48
        %v1439 = vld [vmem:[%s1438] sm:$0xf]
        %v1440 = vld [vmem:[%s1438 + $0x4] sm:$0xf]
        %v1441 = vld [vmem:[%s1438 + $0x8] sm:$0xf]
        %v1442 = vld [vmem:[%s1438 + $0xc] sm:$0xf]
        %v1443 = vperm.slane %v687, 3
        %v1448 = vunpack.c.l.b16 %v1439
        %v1449 = vunpack.c.l.b16 %v1440
        %v1450 = vunpack.c.l.b16 %v1441
        %v1451 = vunpack.c.l.b16 %v1442
        %v1452 = vpack.c.b16 %v1449, %v1448
        %v1453 = vpack.c.b16 %v1451, %v1450
        %1456 = vmatpush.bf16.msra.mxu0 0
        %1457 = vmatpush.bf16.msra.mxu0 0
        %1458 = vmatpush.bf16.msra.mxu0 0
        %1459 = vmatpush.bf16.msra.mxu0 0
        %1460 = vmatpush.bf16.msra.mxu0 0
        %1461 = vmatpush.bf16.msra.mxu0 0
        %1462 = vmatpush.bf16.msra.mxu0 %v1453
        %1463 = vmatpush.bf16.msra.mxu0 %v1452
        %1464 = vmatmul.bf16.gmra.mxu0 %v708
        %v1465 = vpop.f32.mrf.mxu0
        %v1466 = vadd.f32 %v1443, %v1465
        %v1467 = vpop.f32.mrf.mxu0
        %v1468 = vadd.f32 %v1443, %v1467
        %1469 = vdwg.mxu0
        %v1470 = vpack.c.bf16 %v1402, %v1402
        %v1471 = vpack.c.bf16 %v1404, %v1404
        %v1472 = vpack.c.bf16 %v1434, %v1434
        %v1473 = vpack.c.bf16 %v1436, %v1436
        %v1474 = vpack.c.bf16 %v1466, %v1466
        %v1475 = vpack.c.bf16 %v1468, %v1468
        %v1477 = vsel %vm792, %v1470, 0
        %v1480 = vsel %vm792, %v1472, 0
        %1482 = vmatpush.bf16.xpose.msra.mxu0 0
        %1483 = vmatpush.bf16.xpose.msra.mxu0 0
        %1484 = vmatpush.bf16.xpose.msra.mxu0 0
        %1485 = vmatpush.bf16.xpose.msra.mxu0 0
        %1486 = vmatpush.bf16.xpose.msra.mxu0 0
        %1487 = vmatpush.bf16.xpose.msra.mxu0 0
        %1488 = vmatpush.bf16.xpose.msra.mxu0 0
        %1489 = vmatpush.bf16.xpose.msra.mxu0 %v1480
        %1490 = vmatmul.bf16.gmra.mxu0 %v1477
        %v1491 = vpop.f32.mrf.mxu0
        %v1492 = vadd.f32 0.0, %v1491
        %v1493 = vpop.f32.mrf.mxu0
        %1494 = vdwg.mxu0
        %v1496 = vsel %vm792, %v1471, 0
        %v1499 = vsel %vm792, %v1473, 0
        %1501 = vmatpush.bf16.xpose.msra.mxu0 0
        %1502 = vmatpush.bf16.xpose.msra.mxu0 0
        %1503 = vmatpush.bf16.xpose.msra.mxu0 0
        %1504 = vmatpush.bf16.xpose.msra.mxu0 0
        %1505 = vmatpush.bf16.xpose.msra.mxu0 0
        %1506 = vmatpush.bf16.xpose.msra.mxu0 0
        %1507 = vmatpush.bf16.xpose.msra.mxu0 0
        %1508 = vmatpush.bf16.xpose.msra.mxu0 %v1499
        %1509 = vmatmul.bf16.gmra.mxu0 %v1496
        %v1510 = vpop.f32.mrf.mxu0
        %v1511 = vadd.f32 0.0, %v1510
        %v1512 = vpop.f32.mrf.mxu0
        %1513 = vdwg.mxu0
        %v1514 = vmul.f32 %v1492, 0.35355338
        %v1515 = vmul.f32 %v1511, 0.35355338
        %v1516 = vsel %vm792, %v1514, -inf
        %1517 = vmax.xlane.f32.xlu0 %v1516
        %v1518 = vpop.xlane.xlu0 %1517
        %v1519 = vsel %vm792, %v1515, -inf
        %1520 = vmax.xlane.f32.xlu0 %v1519
        %v1521 = vpop.xlane.xlu0 %1520
        %v1522 = vsub.f32 %v1514, %v1518
        %v1523 = vsub.f32 %v1515, %v1521
        %v1524 = vmul.f32 %v1522, 1.442695
        %v1525 = vpow.pop %v1524
        %v1526 = vmul.f32 %v1523, 1.442695
        %v1527 = vpow.pop %v1526
        %v1528 = vsel %vm792, %v1525, 0.0
        %1529 = vadd.xlane.f32.xlu0 %v1528
        %v1530 = vpop.xlane.xlu0 %1529
        %v1531 = vsel %vm792, %v1527, 0.0
        %1532 = vadd.xlane.f32.xlu0 %v1531
        %v1533 = vpop.xlane.xlu0 %1532
        %v1534 = vrcp.pop %v1530
        %v1535 = vrcp.pop %v1533
        %v1536 = vmul.f32 %v1525, %v1534
        %v1537 = vmul.f32 %v1527, %v1535
        %v1538 = vpack.c.bf16 %v1536, %v1536
        %v1539 = vpack.c.bf16 %v1537, %v1537
        %v1541 = vsel %vm792, %v1538, 0
        %v1544 = vsel %vm860, %v1474, 0
        %1546 = vmatpush.bf16.msra.mxu0 0
        %1547 = vmatpush.bf16.msra.mxu0 0
        %1548 = vmatpush.bf16.msra.mxu0 0
        %1549 = vmatpush.bf16.msra.mxu0 0
        %1550 = vmatpush.bf16.msra.mxu0 0
        %1551 = vmatpush.bf16.msra.mxu0 0
        %1552 = vmatpush.bf16.msra.mxu0 0
        %1553 = vmatpush.bf16.msra.mxu0 %v1544
        %1554 = vmatmul.bf16.gmra.mxu0 %v1541
        %v1555 = vpop.f32.mrf.mxu0
        %v1556 = vadd.f32 0.0, %v1555
        %v1557 = vpop.f32.mrf.mxu0
        %1558 = vdwg.mxu0
        %v1560 = vsel %vm792, %v1539, 0
        %v1563 = vsel %vm860, %v1475, 0
        %1565 = vmatpush.bf16.msra.mxu0 0
        %1566 = vmatpush.bf16.msra.mxu0 0
        %1567 = vmatpush.bf16.msra.mxu0 0
        %1568 = vmatpush.bf16.msra.mxu0 0
        %1569 = vmatpush.bf16.msra.mxu0 0
        %1570 = vmatpush.bf16.msra.mxu0 0
        %1571 = vmatpush.bf16.msra.mxu0 0
        %1572 = vmatpush.bf16.msra.mxu0 %v1563
        %1573 = vmatmul.bf16.gmra.mxu0 %v1560
        %v1574 = vpop.f32.mrf.mxu0
        %v1575 = vadd.f32 0.0, %v1574
        %v1576 = vpop.f32.mrf.mxu0
        %1577 = vdwg.mxu0
        %v1578 = vpack.c.bf16 %v1575, %v1556
        %s1579 = scalar_lea.vmem %s641, 12
        %v1580 = vld [vmem:[%s1579] sm:$0xf]
        %v1582 = vsel %vm792, %v1578, 0
        %v1585 = vsel %vm860, %v1580, 0
        %1587 = vmatpush.bf16.msra.mxu0 0
        %1588 = vmatpush.bf16.msra.mxu0 0
        %1589 = vmatpush.bf16.msra.mxu0 0
        %1590 = vmatpush.bf16.msra.mxu0 0
        %1591 = vmatpush.bf16.msra.mxu0 0
        %1592 = vmatpush.bf16.msra.mxu0 0
        %1593 = vmatpush.bf16.msra.mxu0 0
        %1594 = vmatpush.bf16.msra.mxu0 %v1585
        %1595 = vmatmul.bf16.gmra.mxu0 %v1582
        %v1596 = vpop.f32.mrf.mxu0
        %v1597 = vadd.f32 0.0, %v1596
        %v1598 = vpop.f32.mrf.mxu0
        %v1599 = vadd.f32 0.0, %v1598
        %1600 = vdwg.mxu0
        %v1601 = vadd.f32 %v1372, %v1597
        %v1602 = vadd.f32 %v1373, %v1599
        %v1603 = vperm.slane %v688, 0
        %v1604 = vadd.f32 %v1601, %v1603
        %v1605 = vadd.f32 %v1602, %v1603
        %v1606 = vadd.f32 %v682, %v1604
        %v1607 = vadd.f32 %v683, %v1605
        %v1608 = vsel %vm706, %v1606, 0.0
        %1609 = vadd.xlane.f32.xlu0 %v1608
        %v1610 = vpop.xlane.xlu0 %1609
        %v1611 = vsel %vm706, %v1607, 0.0
        %1612 = vadd.xlane.f32.xlu0 %v1611
        %v1613 = vpop.xlane.xlu0 %1612
        %v1614 = vrcp.pop 32.0
        %v1615 = vmul.f32 32.0, %v1614
        %v1616 = vsub.f32 1.0, %v1615
        %v1617 = vmul.f32 %v1614, %v1616
        %v1618 = vadd.f32 %v1614, %v1617
        %vm1619 = vweird.f32 %v1614
        %v1620 = vsel %vm1619, %v1614, %v1618
        %v1621 = vmul.f32 %v1610, %v1620
        %v1622 = vmul.f32 %v1613, %v1620
        %v1623 = vsub.f32 %v1606, %v1621
        %v1624 = vsub.f32 %v1607, %v1622
        %v1625 = vmul.f32 %v1623, %v1623
        %v1626 = vmul.f32 %v1624, %v1624
        %v1627 = vsel %vm706, %v1625, 0.0
        %1628 = vadd.xlane.f32.xlu0 %v1627
        %v1629 = vpop.xlane.xlu0 %1628
        %v1630 = vsel %vm706, %v1626, 0.0
        %1631 = vadd.xlane.f32.xlu0 %v1630
        %v1632 = vpop.xlane.xlu0 %1631
        %v1633 = vmul.f32 %v1629, %v1620
        %v1634 = vmul.f32 %v1632, %v1620
        %v1635 = vadd.f32 %v1633, 1e-05
        %v1636 = vadd.f32 %v1634, 1e-05
        %v1637 = vrsqrt.pop %v1635
        %v1638 = vmul.f32 %v1637, %v1635
        %v1639 = vmul.f32 %v1638, %v1637
        %v1640 = vmul.f32 0.5, %v1639
        %v1641 = vsub.f32 1.5, %v1640
        %v1642 = vmul.f32 %v1637, %v1641
        %vm1643 = vweird.f32 %v1635
        %vm1644 = vweird.f32 %v1637
        %vm1645 = vmor %vm1643, %vm1644
        %v1646 = vsel %vm1645, %v1637, %v1642
        %v1647 = vrsqrt.pop %v1636
        %v1648 = vmul.f32 %v1647, %v1636
        %v1649 = vmul.f32 %v1648, %v1647
        %v1650 = vmul.f32 0.5, %v1649
        %v1651 = vsub.f32 1.5, %v1650
        %v1652 = vmul.f32 %v1647, %v1651
        %vm1653 = vweird.f32 %v1636
        %vm1654 = vweird.f32 %v1647
        %vm1655 = vmor %vm1653, %vm1654
        %v1656 = vsel %vm1655, %v1647, %v1652
        %v1657 = vmul.f32 %v1623, %v1646
        %v1658 = vmul.f32 %v1624, %v1656
        %v1659 = vperm.slane %v688, 1
        %v1660 = vmul.f32 %v1657, %v1659
        %v1661 = vmul.f32 %v1658, %v1659
        %v1662 = vperm.slane %v688, 2
        %v1663 = vadd.f32 %v1660, %v1662
        %v1664 = vadd.f32 %v1661, %v1662
        %v1665 = vpack.c.bf16 %v1664, %v1663
        %v1666 = vld [vmem:[%s646] sm:$0xf]
        %v1667 = vld [vmem:[%s646 + $0x4] sm:$0xf]
        %v1668 = vld [vmem:[%s646 + $0x8] sm:$0xf]
        %v1669 = vld [vmem:[%s646 + $0xc] sm:$0xf]
        %v1670 = vld [vmem:[%s663] sm:$0x1]
        %v1672 = vperm.slane %v1670, 0
        %v1678 = vunpack.c.l.b16 %v1666
        %v1679 = vunpack.c.l.b16 %v1667
        %v1680 = vunpack.c.l.b16 %v1668
        %v1681 = vunpack.c.l.b16 %v1669
        %v1682 = vpack.c.b16 %v1679, %v1678
        %v1683 = vpack.c.b16 %v1681, %v1680
        %v1687 = vsel %vm706, %v1665, 0
        %1689 = vmatpush.bf16.msra.mxu0 0
        %1690 = vmatpush.bf16.msra.mxu0 0
        %1691 = vmatpush.bf16.msra.mxu0 0
        %1692 = vmatpush.bf16.msra.mxu0 0
        %1693 = vmatpush.bf16.msra.mxu0 0
        %1694 = vmatpush.bf16.msra.mxu0 0
        %1695 = vmatpush.bf16.msra.mxu0 %v1683
        %1696 = vmatpush.bf16.msra.mxu0 %v1682
        %1697 = vmatmul.bf16.gmra.mxu0 %v1687
        %v1698 = vpop.f32.mrf.mxu0
        %v1699 = vadd.f32 %v1672, %v1698
        %v1700 = vpop.f32.mrf.mxu0
        %v1701 = vadd.f32 %v1672, %v1700
        %1702 = vdwg.mxu0
        %v1703 = vmax.f32 %v1699, 0.0
        %v1704 = vmax.f32 %v1701, 0.0
        %v1705 = vpack.c.bf16 %v1704, %v1703
        %v1706 = vld [vmem:[%s651] sm:$0xf]
        %v1707 = vld [vmem:[%s651 + $0x4] sm:$0xf]
        %v1708 = vld [vmem:[%s651 + $0x8] sm:$0xf]
        %v1709 = vld [vmem:[%s651 + $0xc] sm:$0xf]
        %v1710 = vld [vmem:[%s651 + $0x10] sm:$0xf]
        %v1711 = vld [vmem:[%s651 + $0x14] sm:$0xf]
        %v1712 = vld [vmem:[%s651 + $0x18] sm:$0xf]
        %v1713 = vld [vmem:[%s651 + $0x1c] sm:$0xf]
        %v1714 = vperm.slane %v688, 3
        %v1723 = vunpack.c.l.b16 %v1706
        %v1724 = vunpack.c.l.b16 %v1707
        %v1725 = vunpack.c.l.b16 %v1708
        %v1726 = vunpack.c.l.b16 %v1709
        %v1727 = vunpack.c.l.b16 %v1710
        %v1728 = vunpack.c.l.b16 %v1711
        %v1729 = vunpack.c.l.b16 %v1712
        %v1730 = vunpack.c.l.b16 %v1713
        %v1731 = vpack.c.b16 %v1724, %v1723
        %v1732 = vpack.c.b16 %v1726, %v1725
        %v1733 = vpack.c.b16 %v1728, %v1727
        %v1734 = vpack.c.b16 %v1730, %v1729
        %vm1739 = vcmask 523264
        %v1741 = vsel %vm1739, %v1705, 0
        %1743 = vmatpush.bf16.msra.mxu0 0
        %1744 = vmatpush.bf16.msra.mxu0 0
        %1745 = vmatpush.bf16.msra.mxu0 0
        %1746 = vmatpush.bf16.msra.mxu0 0
        %1747 = vmatpush.bf16.msra.mxu0 %v1734
        %1748 = vmatpush.bf16.msra.mxu0 %v1733
        %1749 = vmatpush.bf16.msra.mxu0 %v1732
        %1750 = vmatpush.bf16.msra.mxu0 %v1731
        %1751 = vmatmul.bf16.gmra.mxu0 %v1741
        %v1752 = vpop.f32.mrf.mxu0
        %v1753 = vadd.f32 %v1714, %v1752
        %v1754 = vpop.f32.mrf.mxu0
        %v1755 = vadd.f32 %v1714, %v1754
        %1756 = vdwg.mxu0
        %v1757 = vadd.f32 %v1663, %v1753
        %v1758 = vadd.f32 %v1664, %v1755
        %v1759 = vsel %vm706, %v1757, 0.0
        %1760 = vadd.xlane.f32.xlu0 %v1759
        %v1761 = vpop.xlane.xlu0 %1760
        %v1762 = vsel %vm706, %v1758, 0.0
        %1763 = vadd.xlane.f32.xlu0 %v1762
        %v1764 = vpop.xlane.xlu0 %1763
        %v1765 = vmul.f32 %v1761, %v1620
        %v1766 = vmul.f32 %v1764, %v1620
        %v1767 = vsub.f32 %v1757, %v1765
        %v1768 = vsub.f32 %v1758, %v1766
        %v1769 = vmul.f32 %v1767, %v1767
        %v1770 = vmul.f32 %v1768, %v1768
        %v1771 = vsel %vm706, %v1769, 0.0
        %1772 = vadd.xlane.f32.xlu0 %v1771
        %v1773 = vpop.xlane.xlu0 %1772
        %v1774 = vsel %vm706, %v1770, 0.0
        %1775 = vadd.xlane.f32.xlu0 %v1774
        %v1776 = vpop.xlane.xlu0 %1775
        %v1777 = vmul.f32 %v1773, %v1620
        %v1778 = vmul.f32 %v1776, %v1620
        %v1779 = vadd.f32 %v1777, 1e-05
        %v1780 = vadd.f32 %v1778, 1e-05
        %v1781 = vrsqrt.pop %v1779
        %v1782 = vmul.f32 %v1781, %v1779
        %v1783 = vmul.f32 %v1782, %v1781
        %v1784 = vmul.f32 0.5, %v1783
        %v1785 = vsub.f32 1.5, %v1784
        %v1786 = vmul.f32 %v1781, %v1785
        %vm1787 = vweird.f32 %v1779
        %vm1788 = vweird.f32 %v1781
        %vm1789 = vmor %vm1787, %vm1788
        %v1790 = vsel %vm1789, %v1781, %v1786
        %v1791 = vrsqrt.pop %v1780
        %v1792 = vmul.f32 %v1791, %v1780
        %v1793 = vmul.f32 %v1792, %v1791
        %v1794 = vmul.f32 0.5, %v1793
        %v1795 = vsub.f32 1.5, %v1794
        %v1796 = vmul.f32 %v1791, %v1795
        %vm1797 = vweird.f32 %v1780
        %vm1798 = vweird.f32 %v1791
        %vm1799 = vmor %vm1797, %vm1798
        %v1800 = vsel %vm1799, %v1791, %v1796
        %v1801 = vmul.f32 %v1767, %v1790
        %v1802 = vmul.f32 %v1768, %v1800
        %v1803 = vperm.slane %v688, 4
        %v1804 = vmul.f32 %v1801, %v1803
        %v1805 = vmul.f32 %v1802, %v1803
        %v1806 = vperm.slane %v688, 5
        %v1807 = vadd.f32 %v1804, %v1806
        %v1808 = vadd.f32 %v1805, %v1806
        %1809 = vst.msk [vmem:[#allocation2] sm:$0xff] %vm706, %v1807
        %1810 = vst.msk [vmem:[#allocation2 + $0x8] sm:$0xff] %vm706, %v1808
        %p1811 = scmp.eq.s32.totalorder %s32, 1
        // Predicated region
        $region77: #{tpu_custom_call.1} parent=71 // pred_check
          %p1812 = pneg %p1811
        $region78: #{tpu_custom_call.1} parent=71 // pred_check_branch
          %1814 = sbr.rel (%p1812) target = $region80
        $region79: #{tpu_custom_call.1} parent=71 // pred_region
          %v1815 = vpack.c.bf16 %v1807, %v1807
          %v1816 = vpack.c.bf16 %v1808, %v1808
          %v1817 = vld [vmem:[%s10] sm:$0xf]
          %v1818 = vld [vmem:[%s10 + $0x4] sm:$0xf]
          %v1819 = vld [vmem:[%s10 + $0x8] sm:$0xf]
          %v1820 = vld [vmem:[%s10 + $0xc] sm:$0xf]
          %v1821 = vld [vmem:[%s11] sm:$0x1]
          %v1823 = vperm.slane %v1821, 0
          %v1827 = vunpack.c.l.b16 %v1815
          %v1828 = vunpack.c.l.b16 %v1816
          %v1829 = vrot.slane %v1828, 7
          %vm1830 = vcmask 1041409
          %v1831 = vsel %vm1830, %v1829, %v1827
          %v1832 = vpack.c.b16 %v1831, %v1831
          %v1837 = vunpack.c.l.b16 %v1817
          %v1838 = vunpack.c.l.b16 %v1818
          %v1839 = vunpack.c.l.b16 %v1819
          %v1840 = vunpack.c.l.b16 %v1820
          %v1841 = vpack.c.b16 %v1838, %v1837
          %v1842 = vpack.c.b16 %v1840, %v1839
          %v1846 = vsel %vm706, %v1832, 0
          %1848 = vmatpush.bf16.msra.mxu0 0
          %1849 = vmatpush.bf16.msra.mxu0 0
          %1850 = vmatpush.bf16.msra.mxu0 0
          %1851 = vmatpush.bf16.msra.mxu0 0
          %1852 = vmatpush.bf16.msra.mxu0 0
          %1853 = vmatpush.bf16.msra.mxu0 0
          %1854 = vmatpush.bf16.msra.mxu0 %v1842
          %1855 = vmatpush.bf16.msra.mxu0 %v1841
          %1856 = vmatmul.bf16.gmra.mxu0 %v1846
          %v1857 = vpop.f32.mrf.mxu0
          %v1858 = vadd.f32 %v1823, %v1857
          %v1859 = vpop.f32.mrf.mxu0
          %1860 = vdwg.mxu0
          %v1861 = vmul.f32 %v1858, %v1858
          %v1862 = vmul.f32 %v1858, 1.442695
          %v1863 = vpow.pop %v1862
          %1865 = vrot.lane.b32.xlu0 %v1863, 112
          %v1866 = vpop.permute.xlu0 %1865
          %v1868 = vadd.f32 %v1861, %v1866
          %1870 = vrot.lane.b32.xlu0 %v1858, 112
          %v1871 = vpop.permute.xlu0 %1870
          %v1873 = vsub.f32 %v1868, %v1871
          %v1874 = vsub.f32 %v1873, 1.0
          %vm1875 = vcmask 123904
          %v1876 = vsel %vm1875, %v1874, 0.0
          %1877 = vadd.xlane.f32.xlu0 %v1876
          %v1878 = vpop.xlane.xlu0 %1877
          %v1879 = vmul.f32 %v1878, 0.5
          %vm1880 = vcmask 1024
          %1881 = vst.msk [vmem:[%s671] sm:$0x3] %vm1880, %v1879
          %v1882 = vld [vmem:[%s667] sm:$0x3]
          %v1883 = vmul.f32 %v1858, 0.5
          %v1884 = vmul.f32 %v1883, 1.442695
          %v1885 = vpow.pop %v1884
          %1887 = vrot.lane.b32.xlu0 %v1885, 112
          %v1888 = vpop.permute.xlu0 %1887
          %v1890 = vmul.f32 %v1882, %v1888
          %v1891 = vadd.f32 %v1890, %v1858
          %1892 = vrot.lane.b32.xlu0 %v1858, 16
          %v1893 = vpop.permute.xlu0 %1892
          %vm1895 = vcmask 130048
          %v1896 = vsel %vm1895, %v1891, %v1893
          %v1897 = vsel %vm706, %v1896, %v1893
          %vm1898 = vcmask 386048
          %1899 = vst.msk [vmem:[#allocation3] sm:$0x3] %vm1898, %v1897
        $region80: #{tpu_custom_call.1} parent=71 // pred_fallthru
          _
        %p1900 = scmp.lt.s32.totalorder %s31, 0
        %s1901 = scalar_select %p1900, %s31, 0
        %s1902 = smul.addr %s1901, 2
        %s1903 = scalar_lea.vmem %s14, %s1902
        // Predicated region
        $region81: #{tpu_custom_call.1} parent=71 // pred_check
          %p1904 = pneg %p385
        $region82: #{tpu_custom_call.1} parent=71 // pred_check_branch
          %1906 = sbr.rel (%p1904) target = $region84
        $region83: #{tpu_custom_call.1} parent=71 // pred_region
          %1908 = vsyncadd [#allocation4], 0
          %s1909 = smul.addr %s31, 2
          %s1910 = scalar_lea.hbm %s13, %s1909
          %s1912 = sshll.u32 [#allocation3], 4
          %s1913 = int_to_ptr.vmem [resolvable:$true] %s1912
          %s1914 = sshll.u32 %s1910, 4
          %s1915 = int_to_ptr.hbm [resolvable:$true] %s1914
          %1917 = dma.vmem_to_hbm [thread:$0]  %s1913, 32, %s1915, [#allocation4]
        $region84: #{tpu_custom_call.1} parent=71 // pred_fallthru
          _
        // Predicated region
        $region85: #{tpu_custom_call.1} parent=71 // pred_check
          %p1918 = pneg %p411
        $region86: #{tpu_custom_call.1} parent=71 // pred_check_branch
          %1920 = sbr.rel (%p1918) target = $region88
        $region87: #{tpu_custom_call.1} parent=71 // pred_region
          _
        $region88: #{tpu_custom_call.1} parent=71 // pred_fallthru
          _
        // Predicated region
        $region89: #{tpu_custom_call.1} parent=71 // pred_check
          %p1921 = pneg %p385
        $region90: #{tpu_custom_call.1} parent=71 // pred_check_branch
          %1923 = sbr.rel (%p1921) target = $region92
        $region91: #{tpu_custom_call.1} parent=71 // pred_region
          %1925 = dma.done [#allocation4], 32
        $region92: #{tpu_custom_call.1} parent=71 // pred_fallthru
          _
        // Predicated region
        $region93: #{tpu_custom_call.1} parent=71 // pred_check
          %p1926 = pneg %p411
        $region94: #{tpu_custom_call.1} parent=71 // pred_check_branch
          %1928 = sbr.rel (%p1926) target = $region96
        $region95: #{tpu_custom_call.1} parent=71 // pred_region
          %p1929 = scmp.lt.s32.totalorder %s31, 0
          %s1930 = scalar_select %p1929, %s31, 0
          %s1931 = smul.addr %s1930, 2
          %s1932 = scalar_lea.vmem %s14, %s1931
        $region96: #{tpu_custom_call.1} parent=71 // pred_fallthru
          _
      $region72: #{tpu_custom_call.1} parent=5 // pred_fallthru
        _
      %p1933 = scmp.le.s32.totalorder 2, %s22
      // Predicated region
      $region97: #{tpu_custom_call.1} parent=5 // pred_check
        %p1934 = pneg %p1933
      $region98: #{tpu_custom_call.1} parent=5 // pred_check_branch
        %1936 = sbr.rel (%p1934) target = $region100
      $region99: #{tpu_custom_call.1} parent=5 // pred_region
        %s1937 = ssub.s32 %s22, 2
      $region100: #{tpu_custom_call.1} parent=5 // pred_fallthru
        _
    $region6: #{tpu_custom_call.1} parent=1 // loop_footer
      %s26 = sadd.s32 1, %s22
    $region7: #{tpu_custom_call.1} parent=1 // loop_footer_branch
      %21 = sbr.rel target = $region3
    $region8: #{tpu_custom_call.1} parent=1 // loop_exit
      _
    %1938 = vsyncpa [#allocation4], 1
    %s1939 = scalar_lea.sflag [#allocation4], 1
    %1940 = vsyncpa %s1939, 1

</llo_original>
